<compile_context>
chip_gen: v7x
topology: tpu7x:2x2x1
jax: 0.10.0
libtpu: 0.0.40
codegen_flags: <defaults>
</compile_context>

<pallas_src>
import functools

import jax
import jax.numpy as jnp
from jax import lax
from jax.experimental import pallas as pl
from jax.experimental.pallas import tpu as pltpu

HIDDEN = 32
ACT_CLASSES = 10
FEAT_IN = 2048
HAND_HALF = 63            # l_hand / r_hand each
HAND_IN = 2 * HAND_HALF   # 126


# ----------------------------------------------------------------------------
# Kernel A: fused input projections -> LSTM gate pre-activations.
#   out[:, :4H]  = x @ wih_r + (b1@wih_r[:H] + bh@wih_r[H:] + b_r)   (rolling)
#   out[:, 4H:]  = x @ wih_u + (b1@wih_u[:H] + bh@wih_u[H:] + b_u)   (unrolling)
# where x = [fc1(feats), fc_h([lh, rh])] is never materialized.
# Row-tiled over (S*B); single lane-dense (row_tile, 8H=256) store.
# ----------------------------------------------------------------------------
def _gates_kernel(feats_ref, lh_ref, rh_ref, wf_ref, wl_ref, wr_ref, b_ref,
                  out_ref):
    acc = jnp.dot(feats_ref[...], wf_ref[...],
                  preferred_element_type=jnp.float32)
    acc = acc + jnp.dot(lh_ref[...], wl_ref[...],
                        preferred_element_type=jnp.float32)
    acc = acc + jnp.dot(rh_ref[...], wr_ref[...],
                        preferred_element_type=jnp.float32)
    out_ref[...] = acc + b_ref[...]


# ----------------------------------------------------------------------------
# Kernel B: rolling LSTM over S steps + 2-step unrolling LSTM at t = S-1
#           + classifier head.  Serial chain; only `h @ whh` per step.
#           Optional batch-parallel grid axis (independent per batch row).
# ----------------------------------------------------------------------------
def _rulstm_kernel(gates_ref, whh_r_ref, whh_u_ref, wc_ref, bc_ref, out_ref,
                   *, seq_len, hidden, batch_tile):
    H, Bt = hidden, batch_tile
    G = 4 * H

    whh_r = whh_r_ref[...]

    def cell(pre, h, c, whh):
        # gate pre-activations (input part + biases) come precomputed; only
        # the recurrent matmul sits on the serial path.
        g = pre + jnp.dot(h, whh, preferred_element_type=jnp.float32)
        # One sigmoid + one tanh over the full 4H (=128) lanes, then slice.
        sig = jax.nn.sigmoid(g)
        tnh = jnp.tanh(g)
        i = sig[:, 0 * H:1 * H]
        f = sig[:, 1 * H:2 * H]
        gg = tnh[:, 2 * H:3 * H]
        o = sig[:, 3 * H:4 * H]
        c_new = f * c + i * gg
        h_new = o * jnp.tanh(c_new)
        return h_new, c_new

    h = jnp.zeros((Bt, H), jnp.float32)
    c = jnp.zeros((Bt, H), jnp.float32)

    # --- Rolling LSTM (OpenLSTM) over the whole sequence. ---
    if seq_len <= 16:
        # Small S: fully static unroll (max LLO visibility).
        for t in range(seq_len):
            pre = gates_ref[t][:, :G]
            h, c = cell(pre, h, c, whh_r)
    else:
        # Realistic S: bounded unroll keeps code size / vreg pressure sane.
        def body(t, hc):
            hh, cc = hc
            pre = gates_ref[t][:, :G]
            return cell(pre, hh, cc, whh_r)
        h, c = lax.fori_loop(0, seq_len, body, (h, c), unroll=4)

    # --- Unrolling LSTM at t = S-1: 2 steps on repeated x[S-1]. ---
    # Weight load + pre-activation read sunk here (not hoisted over the chain).
    whh_u = whh_u_ref[...]
    pre_u = gates_ref[seq_len - 1][:, G:2 * G]
    for _ in range(2):
        h, c = cell(pre_u, h, c, whh_u)

    # --- Classifier (Dropout is identity in eval mode). ---
    out_ref[...] = (jnp.dot(h, wc_ref[...], preferred_element_type=jnp.float32)
                    + bc_ref[...])


# ----------------------------------------------------------------------------
# Wrapper
# ----------------------------------------------------------------------------
def rulstm_forward(params, feats, lh, rh, act):
    S, B, _ = feats.shape
    H = params["hidden"]
    C = params["wc"].shape[1]
    G = 4 * H
    SB = S * B
    hp = lax.Precision.HIGHEST

    # ---- Weight folding (tiny one-off matmuls, done at HIGHEST precision) ----
    w1, b1 = params["w1"], params["b1"]
    wh, bh = params["wh"], params["bh"]
    wl_h, wr_h = wh[:HAND_HALF], wh[HAND_HALF:]

    def fuse(wih):                       # wih: (2H, 4H)
        wf = jnp.dot(w1, wih[:H], precision=hp)        # (2048, 4H)
        wl = jnp.dot(wl_h, wih[H:], precision=hp)      # (63, 4H)
        wr = jnp.dot(wr_h, wih[H:], precision=hp)      # (63, 4H)
        bf = (jnp.dot(b1, wih[:H], precision=hp)
              + jnp.dot(bh, wih[H:], precision=hp))    # (1, 4H)
        return wf, wl, wr, bf

    wf_r, wl_r, wr_r, bf_r = fuse(params["wih_r"])
    wf_u, wl_u, wr_u, bf_u = fuse(params["wih_u"])
    wf = jnp.concatenate([wf_r, wf_u], axis=1)          # (2048, 8H)
    wl = jnp.concatenate([wl_r, wl_u], axis=1)          # (63, 8H)
    wr = jnp.concatenate([wr_r, wr_u], axis=1)          # (63, 8H)
    bfull = jnp.concatenate([bf_r + params["b_r"],
                             bf_u + params["b_u"]], axis=1)   # (1, 8H)

    feats_flat = feats.reshape(SB, FEAT_IN).astype(jnp.float32)
    lh_flat = lh.reshape(SB, HAND_HALF).astype(jnp.float32)
    rh_flat = rh.reshape(SB, HAND_HALF).astype(jnp.float32)

    # ---- Kernel A: BW-bound, row-tiled, lane-dense 256-lane output. ----
    row_tile = SB if SB <= 512 else 512
    grid_a = (pl.cdiv(SB, row_tile),)
    gates_flat = pl.pallas_call(
        _gates_kernel,
        out_shape=jax.ShapeDtypeStruct((SB, 8 * H), jnp.float32),
        grid=grid_a,
        in_specs=[pl.BlockSpec((row_tile, FEAT_IN), lambda i: (i, 0)),
                  pl.BlockSpec((row_tile, HAND_HALF), lambda i: (i, 0)),
                  pl.BlockSpec((row_tile, HAND_HALF), lambda i: (i, 0)),
                  pl.BlockSpec(wf.shape, lambda i: (0, 0)),
                  pl.BlockSpec(wl.shape, lambda i: (0, 0)),
                  pl.BlockSpec(wr.shape, lambda i: (0, 0)),
                  pl.BlockSpec(bfull.shape, lambda i: (0, 0))],
        out_specs=pl.BlockSpec((row_tile, 8 * H), lambda i: (i, 0)),
        compiler_params=pltpu.CompilerParams(
            dimension_semantics=("parallel",),
            vmem_limit_bytes=64 << 20),   # v5e default (16 MiB) too small at row_tile=512
    )(feats_flat, lh_flat, rh_flat, wf, wl, wr, bfull)
    gates = gates_flat.reshape(S, B, 8 * H)

    # ---- Kernel B: serial LSTM chain; batch-parallel grid when B allows. ----
    nb = 2 if (B >= 16 and B % 16 == 0) else 1
    Bt = B // nb
    kernel = functools.partial(_rulstm_kernel, seq_len=S, hidden=H,
                               batch_tile=Bt)
    out = pl.pallas_call(
        kernel,
        out_shape=jax.ShapeDtypeStruct((B, C), jnp.float32),
        grid=(nb,),
        in_specs=[pl.BlockSpec((S, Bt, 8 * H), lambda b: (0, b, 0)),
                  pl.BlockSpec((H, 4 * H), lambda b: (0, 0)),
                  pl.BlockSpec((H, 4 * H), lambda b: (0, 0)),
                  pl.BlockSpec((H, C), lambda b: (0, 0)),
                  pl.BlockSpec((1, C), lambda b: (0, 0))],
        out_specs=pl.BlockSpec((Bt, C), lambda b: (b, 0)),
        compiler_params=pltpu.CompilerParams(
            dimension_semantics=("parallel",)),
    )(gates, params["whh_r"], params["whh_u"], params["wc"], params["bc"])

    # Glue: argmax + cross-entropy (tiny scalar ops, plain JAX).
    pred = jnp.argmax(out, axis=1)
    logz = jax.scipy.special.logsumexp(out, axis=-1)
    loss = jnp.mean(logz - out[jnp.arange(out.shape[0]), act])
    return out, pred, loss


# ----------------------------------------------------------------------------
# Deterministic parameter init (synthetic; shapes from RULSTM.__init__)
# ----------------------------------------------------------------------------
def init_params(key, hidden=HIDDEN, act_classes=ACT_CLASSES):
    ks = jax.random.split(key, 12)
    sc = 0.05

    def nrm(k, shape):
        return jax.random.normal(k, shape, jnp.float32) * sc

    return dict(
        hidden=hidden,
        # fc1: Linear(2048, hidden); fc_h: Linear(126, hidden)
        w1=nrm(ks[0], (FEAT_IN, hidden)), b1=nrm(ks[1], (1, hidden)),
        wh=nrm(ks[2], (HAND_IN, hidden)), bh=nrm(ks[3], (1, hidden)),
        # rolling LSTM(2*hidden -> hidden), b = b_ih + b_hh combined
        wih_r=nrm(ks[4], (2 * hidden, 4 * hidden)),
        whh_r=nrm(ks[5], (hidden, 4 * hidden)),
        b_r=nrm(ks[6], (1, 4 * hidden)),
        # unrolling LSTM(2*hidden -> hidden)
        wih_u=nrm(ks[7], (2 * hidden, 4 * hidden)),
        whh_u=nrm(ks[8], (hidden, 4 * hidden)),
        b_u=nrm(ks[9], (1, 4 * hidden)),
        # classifier: Linear(hidden, act_classes)
        wc=nrm(ks[10], (hidden, act_classes)),
        bc=nrm(ks[11], (1, act_classes)),
    )


# ----------------------------------------------------------------------------
# Pure-JAX reference (full per-t computation, mirrors the PyTorch module)
# ----------------------------------------------------------------------------
def rulstm_reference(params, feats, lh, rh, act):
    H = params["hidden"]
    S, B, _ = feats.shape
    hp = lax.Precision.HIGHEST

    hands = jnp.concatenate([lh, rh], -1).astype(jnp.float32)
    xf = jnp.dot(feats.reshape(S * B, -1), params["w1"], precision=hp) + params["b1"]
    xh = jnp.dot(hands.reshape(S * B, -1), params["wh"], precision=hp) + params["bh"]
    x = jnp.concatenate([xf, xh], -1).reshape(S, B, 2 * H)

    def cell(x_t, h, c, wih, whh, b):
        g = jnp.dot(x_t, wih, precision=hp) + jnp.dot(h, whh, precision=hp) + b
        i = jax.nn.sigmoid(g[:, :H])
        f = jax.nn.sigmoid(g[:, H:2 * H])
        gg = jnp.tanh(g[:, 2 * H:3 * H])
        o = jax.nn.sigmoid(g[:, 3 * H:])
        c_new = f * c + i * gg
        return o * jnp.tanh(c_new), c_new

    h = jnp.zeros((B, H), jnp.float32)
    c = jnp.zeros((B, H), jnp.float32)
    preds = []
    for t in range(S):
        h, c = cell(x[t], h, c, params["wih_r"], params["whh_r"], params["b_r"])
        hu, cu = h, c
        for _ in range(S - t + 1):
            hu, cu = cell(x[t], hu, cu,
                          params["wih_u"], params["whh_u"], params["b_u"])
        preds.append(hu)
    out = jnp.dot(preds[-1], params["wc"], precision=hp) + params["bc"]
    pred = jnp.argmax(out, axis=1)
    logz = jax.scipy.special.logsumexp(out, axis=-1)
    loss = jnp.mean(logz - out[jnp.arange(B), act])
    return out, pred, loss


if __name__ == "__main__":
    key = jax.random.PRNGKey(0)
    kp, kf, kl, kr, ka = jax.random.split(key, 5)

    S, B = 8, 2
    params = init_params(kp)
    feats = jax.random.normal(kf, (S, B, FEAT_IN), jnp.float32)
    lh = jax.random.normal(kl, (S, B, HAND_HALF), jnp.float32)
    rh = jax.random.normal(kr, (S, B, HAND_HALF), jnp.float32)
    act = jax.random.randint(ka, (B,), 0, ACT_CLASSES)

    out, pred, loss = rulstm_forward(params, feats, lh, rh, act)
    jax.block_until_ready((out, pred, loss))

    out_r, pred_r, loss_r = rulstm_reference(params, feats, lh, rh, act)
    assert jnp.allclose(out, out_r, atol=1e-2, rtol=1e-2), "logits mismatch"
    assert bool(jnp.all(pred == pred_r)), "argmax mismatch"
    assert jnp.allclose(loss, loss_r, atol=1e-2, rtol=1e-2), "loss mismatch"

    print("KERNEL_OK")
</pallas_src>

<mosaic_0001>
module attributes {stable_mosaic.version = 11 : i64} {
  func.func @_gates_kernel(%arg0: i32, %arg1: memref<16x2048xf32, #tpu.memory_space<vmem>>, %arg2: memref<16x63xf32, #tpu.memory_space<vmem>>, %arg3: memref<16x63xf32, #tpu.memory_space<vmem>>, %arg4: memref<2048x256xf32, #tpu.memory_space<vmem>>, %arg5: memref<63x256xf32, #tpu.memory_space<vmem>>, %arg6: memref<63x256xf32, #tpu.memory_space<vmem>>, %arg7: memref<1x256xf32, #tpu.memory_space<vmem>>, %arg8: memref<16x256xf32, #tpu.memory_space<vmem>>) attributes {dimension_semantics = [#tpu.dimension_semantics<parallel>], iteration_bounds = array<i64: 1>, scalar_prefetch = 0 : i64, scratch_operands = 0 : i64, tpu.core_type = #tpu.core_type<tc>, window_params = [{transform_indices = @transform_0, window_bounds = array<i64: 16, 2048>}, {transform_indices = @transform_1, window_bounds = array<i64: 16, 63>}, {transform_indices = @transform_2, window_bounds = array<i64: 16, 63>}, {pipeline_mode = #tpu.pipeline_mode<synchronous>, transform_indices = @transform_3, window_bounds = array<i64: 2048, 256>}, {pipeline_mode = #tpu.pipeline_mode<synchronous>, transform_indices = @transform_4, window_bounds = array<i64: 63, 256>}, {pipeline_mode = #tpu.pipeline_mode<synchronous>, transform_indices = @transform_5, window_bounds = array<i64: 63, 256>}, {pipeline_mode = #tpu.pipeline_mode<synchronous>, transform_indices = @transform_6, window_bounds = array<i64: 1, 256>}, {transform_indices = @transform_7, window_bounds = array<i64: 16, 256>}]} {
    %c0 = arith.constant 0 : index
    %c0_0 = arith.constant 0 : index
    %0 = vector.load %arg1[%c0, %c0_0] : memref<16x2048xf32, #tpu.memory_space<vmem>>, vector<16x2048xf32>
    %c0_1 = arith.constant 0 : index
    %c0_2 = arith.constant 0 : index
    %1 = vector.load %arg4[%c0_1, %c0_2] : memref<2048x256xf32, #tpu.memory_space<vmem>>, vector<2048x256xf32>
    %cst = arith.constant dense<0.000000e+00> : vector<16x256xf32>
    %2 = tpu.matmul %0, %1, %cst {dimension_numbers = #tpu.dot_dimension_numbers<[1], [0], [0], [1], [0, 0, 1, 1], [], []>} : vector<16x2048xf32>, vector<2048x256xf32>, vector<16x256xf32> -> vector<16x256xf32>
    %c0_3 = arith.constant 0 : index
    %c0_4 = arith.constant 0 : index
    %3 = vector.load %arg2[%c0_3, %c0_4] : memref<16x63xf32, #tpu.memory_space<vmem>>, vector<16x63xf32>
    %c0_5 = arith.constant 0 : index
    %c0_6 = arith.constant 0 : index
    %4 = vector.load %arg5[%c0_5, %c0_6] : memref<63x256xf32, #tpu.memory_space<vmem>>, vector<63x256xf32>
    %cst_7 = arith.constant dense<0.000000e+00> : vector<16x256xf32>
    %5 = tpu.matmul %3, %4, %cst_7 {dimension_numbers = #tpu.dot_dimension_numbers<[1], [0], [0], [1], [0, 0, 1, 1], [], []>} : vector<16x63xf32>, vector<63x256xf32>, vector<16x256xf32> -> vector<16x256xf32>
    %6 = arith.addf %2, %5 : vector<16x256xf32>
    %c0_8 = arith.constant 0 : index
    %c0_9 = arith.constant 0 : index
    %7 = vector.load %arg3[%c0_8, %c0_9] : memref<16x63xf32, #tpu.memory_space<vmem>>, vector<16x63xf32>
    %c0_10 = arith.constant 0 : index
    %c0_11 = arith.constant 0 : index
    %8 = vector.load %arg6[%c0_10, %c0_11] : memref<63x256xf32, #tpu.memory_space<vmem>>, vector<63x256xf32>
    %cst_12 = arith.constant dense<0.000000e+00> : vector<16x256xf32>
    %9 = tpu.matmul %7, %8, %cst_12 {dimension_numbers = #tpu.dot_dimension_numbers<[1], [0], [0], [1], [0, 0, 1, 1], [], []>} : vector<16x63xf32>, vector<63x256xf32>, vector<16x256xf32> -> vector<16x256xf32>
    %10 = arith.addf %6, %9 : vector<16x256xf32>
    %c0_13 = arith.constant 0 : index
    %c0_14 = arith.constant 0 : index
    %11 = vector.load %arg7[%c0_13, %c0_14] : memref<1x256xf32, #tpu.memory_space<vmem>>, vector<1x256xf32>
    %12 = vector.broadcast %11 : vector<1x256xf32> to vector<16x256xf32>
    %13 = arith.addf %10, %12 : vector<16x256xf32>
    %c0_15 = arith.constant 0 : index
    %c0_16 = arith.constant 0 : index
    %14 = vector.load %arg8[%c0_15, %c0_16] : memref<16x256xf32, #tpu.memory_space<vmem>>, vector<16x256xf32>
    tpu.vector_store %arg8[%c0_15, %c0_16], %13 {strides = array<i32>} : memref<16x256xf32, #tpu.memory_space<vmem>>, vector<16x256xf32>,
    return
  }
  func.func @transform_0(%arg0: i32) -> (i32, i32) {
    %c0_i32 = arith.constant 0 : i32
    %c0_i32_0 = arith.constant 0 : i32
    return %arg0, %c0_i32 : i32, i32
  }
  func.func @transform_1(%arg0: i32) -> (i32, i32) {
    %c0_i32 = arith.constant 0 : i32
    %c0_i32_0 = arith.constant 0 : i32
    return %arg0, %c0_i32 : i32, i32
  }
  func.func @transform_2(%arg0: i32) -> (i32, i32) {
    %c0_i32 = arith.constant 0 : i32
    %c0_i32_0 = arith.constant 0 : i32
    return %arg0, %c0_i32 : i32, i32
  }
  func.func @transform_3(%arg0: i32) -> (i32, i32) {
    %c0_i32 = arith.constant 0 : i32
    %c0_i32_0 = arith.constant 0 : i32
    %c0_i32_1 = arith.constant 0 : i32
    return %c0_i32, %c0_i32_0 : i32, i32
  }
  func.func @transform_4(%arg0: i32) -> (i32, i32) {
    %c0_i32 = arith.constant 0 : i32
    %c0_i32_0 = arith.constant 0 : i32
    %c0_i32_1 = arith.constant 0 : i32
    return %c0_i32, %c0_i32_0 : i32, i32
  }
  func.func @transform_5(%arg0: i32) -> (i32, i32) {
    %c0_i32 = arith.constant 0 : i32
    %c0_i32_0 = arith.constant 0 : i32
    %c0_i32_1 = arith.constant 0 : i32
    return %c0_i32, %c0_i32_0 : i32, i32
  }
  func.func @transform_6(%arg0: i32) -> (i32, i32) {
    %c0_i32 = arith.constant 0 : i32
    %c0_i32_0 = arith.constant 0 : i32
    %c0_i32_1 = arith.constant 0 : i32
    return %c0_i32, %c0_i32_0 : i32, i32
  }
  func.func @transform_7(%arg0: i32) -> (i32, i32) {
    %c0_i32 = arith.constant 0 : i32
    %c0_i32_0 = arith.constant 0 : i32
    return %arg0, %c0_i32 : i32, i32
  }
}

</mosaic_0001>

<llo_original>
// kernel: tpu_custom_call.1
$region0: #{tpu_custom_call.1}
  #allocation0 [shape = 'u32[]', space=smem, size = 0x4, offset = 0x4, fixed_abs, tag = 'smem constant byte address 0x4 - core index']
  #allocation1 [shape = 'u32[144,128]{1,0:T(1,128)}', space=vmem, size = 0x12000, scoped, tag = 'internal scratch']
  %s0 = inlined_call_operand.hbm [shape: f32[16,2048], index: 0, kind: input, shape index: {}]
  %s1 = inlined_call_operand.hbm [shape: f32[16,63], index: 1, kind: input, shape index: {}]
  %s2 = inlined_call_operand.hbm [shape: f32[16,63], index: 2, kind: input, shape index: {}]
  %s3 = inlined_call_operand.hbm [shape: f32[2048,256], index: 3, kind: input, shape index: {}]
  %s4 = inlined_call_operand.hbm [shape: f32[63,256], index: 4, kind: input, shape index: {}]
  %s5 = inlined_call_operand.hbm [shape: f32[63,256], index: 5, kind: input, shape index: {}]
  %s6 = inlined_call_operand.hbm [shape: f32[1,256], index: 6, kind: input, shape index: {}]
  %s7 = inlined_call_operand.hbm [shape: f32[16,256], index: 7, kind: output, shape index: {}]
  %s8 = sld [smem:[#allocation0]]
  $region66: #{tpu_custom_call.1} parent=0
    _
  %s10 = ssub.s32 1, %s8
  %s11 = scalar_select 0, %s10, %s8
  $region1: #{tpu_custom_call.1} parent=0
    #allocation2 [shape = 'u8[131072]{0}', space=vmem, size = 0x20000, scoped, tag = 'input window, operand 0, single buffered']
    #allocation3 [shape = 's32[1]{0}', space=sflag, size = 0x4, scoped, tag = 'scoped memory for tpu_custom_call.1']
    #allocation4 [shape = 's32[1]{0}', space=sflag, size = 0x4, scoped, tag = 'scoped memory for tpu_custom_call.1']
    #allocation5 [shape = 'u8[8192]{0}', space=vmem, size = 0x2000, scoped, tag = 'input window, operand 1, single buffered']
    #allocation6 [shape = 's32[1]{0}', space=sflag, size = 0x4, scoped, tag = 'scoped memory for tpu_custom_call.1']
    #allocation7 [shape = 'u8[8192]{0}', space=vmem, size = 0x2000, scoped, tag = 'input window, operand 2, single buffered']
    #allocation8 [shape = 'u8[2097152]{0}', space=vmem, size = 0x200000, scoped, tag = 'input window, operand 3, single buffered']
    #allocation9 [shape = 's32[1]{0}', space=sflag, size = 0x4, scoped, tag = 'scoped memory for tpu_custom_call.1']
    #allocation10 [shape = 'u8[65536]{0}', space=vmem, size = 0x10000, scoped, tag = 'input window, operand 4, single buffered']
    #allocation11 [shape = 'u8[65536]{0}', space=vmem, size = 0x10000, scoped, tag = 'input window, operand 5, single buffered']
    #allocation12 [shape = 's32[1]{0}', space=sflag, size = 0x4, scoped, tag = 'scoped memory for tpu_custom_call.1']
    #allocation13 [shape = 'u8[1024]{0}', space=vmem, size = 0x400, scoped, tag = 'input window, operand 6, single buffered']
    #allocation14 [shape = 'u8[16384]{0}', space=vmem, size = 0x4000, scoped, tag = 'output window, operand 0, single buffered']
    %12 = vsyncpa [#allocation3], 0
    %13 = vsyncpa [#allocation6], 0
    %14 = vsyncpa [#allocation9], 0
    %15 = vsyncpa [#allocation12], 0
    %16 = vsyncpa [#allocation4], 0
    // Predicated region
    $region2: #{tpu_custom_call.1} parent=1 // pred_check
      _
    $region3: #{tpu_custom_call.1} parent=1 // pred_check_branch
      %18 = sbr.rel (0) target = $region5
    $region4: #{tpu_custom_call.1} parent=1 // pred_region
      %s20 = ssub.s32 4096, 4096
      %21 = vsyncadd [#allocation3], %s20
      %s22 = sshll.u32 [#allocation2], 4
      %s23 = int_to_ptr.vmem [resolvable:$true] %s22
      %28 = dma.hbm_to_vmem [thread:$0]  %s0, 4096, %s23, [#allocation3], 2048, 2048, 128
    $region5: #{tpu_custom_call.1} parent=1 // pred_fallthru
      _
    // Predicated region
    $region6: #{tpu_custom_call.1} parent=1 // pred_check
      _
    $region7: #{tpu_custom_call.1} parent=1 // pred_check_branch
      %30 = sbr.rel (0) target = $region9
    $region8: #{tpu_custom_call.1} parent=1 // pred_region
      %s32 = ssub.s32 256, 256
      %33 = vsyncadd [#allocation6], %s32
      %s34 = sshll.u32 [#allocation5], 4
      %s35 = int_to_ptr.vmem [resolvable:$true] %s34
      %40 = dma.hbm_to_vmem [thread:$0]  %s1, 256, %s35, [#allocation6], 128, 128, 8
    $region9: #{tpu_custom_call.1} parent=1 // pred_fallthru
      _
    // Predicated region
    $region10: #{tpu_custom_call.1} parent=1 // pred_check
      _
    $region11: #{tpu_custom_call.1} parent=1 // pred_check_branch
      %42 = sbr.rel (0) target = $region13
    $region12: #{tpu_custom_call.1} parent=1 // pred_region
      %s44 = ssub.s32 256, 256
      %45 = vsyncadd [#allocation6], %s44
      %s46 = sshll.u32 [#allocation7], 4
      %s47 = int_to_ptr.vmem [resolvable:$true] %s46
      %52 = dma.hbm_to_vmem [thread:$0]  %s2, 256, %s47, [#allocation6], 128, 128, 8
    $region13: #{tpu_custom_call.1} parent=1 // pred_fallthru
      _
    // Predicated region
    $region14: #{tpu_custom_call.1} parent=1 // pred_check
      _
    $region15: #{tpu_custom_call.1} parent=1 // pred_check_branch
      %54 = sbr.rel (0) target = $region17
    $region16: #{tpu_custom_call.1} parent=1 // pred_region
      %s56 = ssub.s32 65536, 65536
      %57 = vsyncadd [#allocation9], %s56
      %s58 = sshll.u32 [#allocation8], 4
      %s59 = int_to_ptr.vmem [resolvable:$true] %s58
      %64 = dma.hbm_to_vmem [thread:$0]  %s3, 65536, %s59, [#allocation9], 256, 256, 16
    $region17: #{tpu_custom_call.1} parent=1 // pred_fallthru
      _
    // Predicated region
    $region18: #{tpu_custom_call.1} parent=1 // pred_check
      _
    $region19: #{tpu_custom_call.1} parent=1 // pred_check_branch
      %66 = sbr.rel (0) target = $region21
    $region20: #{tpu_custom_call.1} parent=1 // pred_region
      %s68 = ssub.s32 2048, 2048
      %69 = vsyncadd [#allocation9], %s68
      %s70 = sshll.u32 [#allocation10], 4
      %s71 = int_to_ptr.vmem [resolvable:$true] %s70
      %76 = dma.hbm_to_vmem [thread:$0]  %s4, 2048, %s71, [#allocation9], 256, 256, 16
    $region21: #{tpu_custom_call.1} parent=1 // pred_fallthru
      _
    // Predicated region
    $region22: #{tpu_custom_call.1} parent=1 // pred_check
      _
    $region23: #{tpu_custom_call.1} parent=1 // pred_check_branch
      %78 = sbr.rel (0) target = $region25
    $region24: #{tpu_custom_call.1} parent=1 // pred_region
      %s80 = ssub.s32 2048, 2048
      %81 = vsyncadd [#allocation12], %s80
      %s82 = sshll.u32 [#allocation11], 4
      %s83 = int_to_ptr.vmem [resolvable:$true] %s82
      %88 = dma.hbm_to_vmem [thread:$0]  %s5, 2048, %s83, [#allocation12], 256, 256, 16
    $region25: #{tpu_custom_call.1} parent=1 // pred_fallthru
      _
    // Predicated region
    $region26: #{tpu_custom_call.1} parent=1 // pred_check
      _
    $region27: #{tpu_custom_call.1} parent=1 // pred_check_branch
      %90 = sbr.rel (0) target = $region29
    $region28: #{tpu_custom_call.1} parent=1 // pred_region
      %s92 = ssub.s32 32, 32
      %93 = vsyncadd [#allocation12], %s92
      %s95 = sshll.u32 [#allocation13], 4
      %s96 = int_to_ptr.vmem [resolvable:$true] %s95
      %98 = dma.hbm_to_vmem [thread:$0]  %s6, 32, %s96, [#allocation12]
    $region29: #{tpu_custom_call.1} parent=1 // pred_fallthru
      _
    // Predicated region
    $region30: #{tpu_custom_call.1} parent=1 // pred_check
      _
    $region31: #{tpu_custom_call.1} parent=1 // pred_check_branch
      %100 = sbr.rel (0) target = $region33
    $region32: #{tpu_custom_call.1} parent=1 // pred_region
      %101 = dma.done [#allocation3], 4096
    $region33: #{tpu_custom_call.1} parent=1 // pred_fallthru
      _
    // Predicated region
    $region34: #{tpu_custom_call.1} parent=1 // pred_check
      _
    $region35: #{tpu_custom_call.1} parent=1 // pred_check_branch
      %103 = sbr.rel (0) target = $region37
    $region36: #{tpu_custom_call.1} parent=1 // pred_region
      %104 = dma.done [#allocation6], 256
    $region37: #{tpu_custom_call.1} parent=1 // pred_fallthru
      _
    // Predicated region
    $region38: #{tpu_custom_call.1} parent=1 // pred_check
      _
    $region39: #{tpu_custom_call.1} parent=1 // pred_check_branch
      %106 = sbr.rel (0) target = $region41
    $region40: #{tpu_custom_call.1} parent=1 // pred_region
      %107 = dma.done [#allocation6], 256
    $region41: #{tpu_custom_call.1} parent=1 // pred_fallthru
      _
    // Predicated region
    $region42: #{tpu_custom_call.1} parent=1 // pred_check
      _
    $region43: #{tpu_custom_call.1} parent=1 // pred_check_branch
      %109 = sbr.rel (0) target = $region45
    $region44: #{tpu_custom_call.1} parent=1 // pred_region
      %110 = dma.done [#allocation9], 65536
    $region45: #{tpu_custom_call.1} parent=1 // pred_fallthru
      _
    // Predicated region
    $region46: #{tpu_custom_call.1} parent=1 // pred_check
      _
    $region47: #{tpu_custom_call.1} parent=1 // pred_check_branch
      %112 = sbr.rel (0) target = $region49
    $region48: #{tpu_custom_call.1} parent=1 // pred_region
      %113 = dma.done [#allocation9], 2048
    $region49: #{tpu_custom_call.1} parent=1 // pred_fallthru
      _
    // Predicated region
    $region50: #{tpu_custom_call.1} parent=1 // pred_check
      _
    $region51: #{tpu_custom_call.1} parent=1 // pred_check_branch
      %115 = sbr.rel (0) target = $region53
    $region52: #{tpu_custom_call.1} parent=1 // pred_region
      %116 = dma.done [#allocation12], 2048
    $region53: #{tpu_custom_call.1} parent=1 // pred_fallthru
      _
    // Predicated region
    $region54: #{tpu_custom_call.1} parent=1 // pred_check
      _
    $region55: #{tpu_custom_call.1} parent=1 // pred_check_branch
      %118 = sbr.rel (0) target = $region57
    $region56: #{tpu_custom_call.1} parent=1 // pred_region
      %119 = dma.done [#allocation12], 32
    $region57: #{tpu_custom_call.1} parent=1 // pred_fallthru
      _
    %v120 = vld [vmem:[#allocation2] sm:$0xff]
    %v121 = vld [vmem:[#allocation2 + $0x8] sm:$0xff]
    %v122 = vld [vmem:[#allocation2 + $0x10] sm:$0xff]
    %v123 = vld [vmem:[#allocation2 + $0x18] sm:$0xff]
    %v124 = vld [vmem:[#allocation2 + $0x20] sm:$0xff]
    %v125 = vld [vmem:[#allocation2 + $0x28] sm:$0xff]
    %v126 = vld [vmem:[#allocation2 + $0x30] sm:$0xff]
    %v127 = vld [vmem:[#allocation2 + $0x38] sm:$0xff]
    %v128 = vld [vmem:[#allocation2 + $0x40] sm:$0xff]
    %v129 = vld [vmem:[#allocation2 + $0x48] sm:$0xff]
    %v130 = vld [vmem:[#allocation2 + $0x50] sm:$0xff]
    %v131 = vld [vmem:[#allocation2 + $0x58] sm:$0xff]
    %v132 = vld [vmem:[#allocation2 + $0x60] sm:$0xff]
    %v133 = vld [vmem:[#allocation2 + $0x68] sm:$0xff]
    %v134 = vld [vmem:[#allocation2 + $0x70] sm:$0xff]
    %v135 = vld [vmem:[#allocation2 + $0x78] sm:$0xff]
    %v136 = vld [vmem:[#allocation2 + $0x80] sm:$0xff]
    %v137 = vld [vmem:[#allocation2 + $0x88] sm:$0xff]
    %v138 = vld [vmem:[#allocation2 + $0x90] sm:$0xff]
    %v139 = vld [vmem:[#allocation2 + $0x98] sm:$0xff]
    %v140 = vld [vmem:[#allocation2 + $0xa0] sm:$0xff]
    %v141 = vld [vmem:[#allocation2 + $0xa8] sm:$0xff]
    %v142 = vld [vmem:[#allocation2 + $0xb0] sm:$0xff]
    %v143 = vld [vmem:[#allocation2 + $0xb8] sm:$0xff]
    %v144 = vld [vmem:[#allocation2 + $0xc0] sm:$0xff]
    %v145 = vld [vmem:[#allocation2 + $0xc8] sm:$0xff]
    %v146 = vld [vmem:[#allocation2 + $0xd0] sm:$0xff]
    %v147 = vld [vmem:[#allocation2 + $0xd8] sm:$0xff]
    %v148 = vld [vmem:[#allocation2 + $0xe0] sm:$0xff]
    %v149 = vld [vmem:[#allocation2 + $0xe8] sm:$0xff]
    %v150 = vld [vmem:[#allocation2 + $0xf0] sm:$0xff]
    %v151 = vld [vmem:[#allocation2 + $0xf8] sm:$0xff]
    %v152 = vld [vmem:[#allocation8] sm:$0xff]
    %v153 = vld [vmem:[#allocation8 + $0x8] sm:$0xff]
    %v154 = vld [vmem:[#allocation8 + $0x10] sm:$0xff]
    %v155 = vld [vmem:[#allocation8 + $0x18] sm:$0xff]
    %v156 = vld [vmem:[#allocation8 + $0x20] sm:$0xff]
    %v157 = vld [vmem:[#allocation8 + $0x28] sm:$0xff]
    %v158 = vld [vmem:[#allocation8 + $0x30] sm:$0xff]
    %v159 = vld [vmem:[#allocation8 + $0x38] sm:$0xff]
    %v160 = vld [vmem:[#allocation8 + $0x40] sm:$0xff]
    %v161 = vld [vmem:[#allocation8 + $0x48] sm:$0xff]
    %v162 = vld [vmem:[#allocation8 + $0x50] sm:$0xff]
    %v163 = vld [vmem:[#allocation8 + $0x58] sm:$0xff]
    %v164 = vld [vmem:[#allocation8 + $0x60] sm:$0xff]
    %v165 = vld [vmem:[#allocation8 + $0x68] sm:$0xff]
    %v166 = vld [vmem:[#allocation8 + $0x70] sm:$0xff]
    %v167 = vld [vmem:[#allocation8 + $0x78] sm:$0xff]
    %v168 = vld [vmem:[#allocation8 + $0x80] sm:$0xff]
    %v169 = vld [vmem:[#allocation8 + $0x88] sm:$0xff]
    %v170 = vld [vmem:[#allocation8 + $0x90] sm:$0xff]
    %v171 = vld [vmem:[#allocation8 + $0x98] sm:$0xff]
    %v172 = vld [vmem:[#allocation8 + $0xa0] sm:$0xff]
    %v173 = vld [vmem:[#allocation8 + $0xa8] sm:$0xff]
    %v174 = vld [vmem:[#allocation8 + $0xb0] sm:$0xff]
    %v175 = vld [vmem:[#allocation8 + $0xb8] sm:$0xff]
    %v176 = vld [vmem:[#allocation8 + $0xc0] sm:$0xff]
    %v177 = vld [vmem:[#allocation8 + $0xc8] sm:$0xff]
    %v178 = vld [vmem:[#allocation8 + $0xd0] sm:$0xff]
    %v179 = vld [vmem:[#allocation8 + $0xd8] sm:$0xff]
    %v180 = vld [vmem:[#allocation8 + $0xe0] sm:$0xff]
    %v181 = vld [vmem:[#allocation8 + $0xe8] sm:$0xff]
    %v182 = vld [vmem:[#allocation8 + $0xf0] sm:$0xff]
    %v183 = vld [vmem:[#allocation8 + $0xf8] sm:$0xff]
    %v184 = vld [vmem:[#allocation8 + $0x100] sm:$0xff]
    %v185 = vld [vmem:[#allocation8 + $0x108] sm:$0xff]
    %v186 = vld [vmem:[#allocation8 + $0x110] sm:$0xff]
    %v187 = vld [vmem:[#allocation8 + $0x118] sm:$0xff]
    %v188 = vld [vmem:[#allocation8 + $0x120] sm:$0xff]
    %v189 = vld [vmem:[#allocation8 + $0x128] sm:$0xff]
    %v190 = vld [vmem:[#allocation8 + $0x130] sm:$0xff]
    %v191 = vld [vmem:[#allocation8 + $0x138] sm:$0xff]
    %v192 = vld [vmem:[#allocation8 + $0x140] sm:$0xff]
    %v193 = vld [vmem:[#allocation8 + $0x148] sm:$0xff]
    %v194 = vld [vmem:[#allocation8 + $0x150] sm:$0xff]
    %v195 = vld [vmem:[#allocation8 + $0x158] sm:$0xff]
    %v196 = vld [vmem:[#allocation8 + $0x160] sm:$0xff]
    %v197 = vld [vmem:[#allocation8 + $0x168] sm:$0xff]
    %v198 = vld [vmem:[#allocation8 + $0x170] sm:$0xff]
    %v199 = vld [vmem:[#allocation8 + $0x178] sm:$0xff]
    %v200 = vld [vmem:[#allocation8 + $0x180] sm:$0xff]
    %v201 = vld [vmem:[#allocation8 + $0x188] sm:$0xff]
    %v202 = vld [vmem:[#allocation8 + $0x190] sm:$0xff]
    %v203 = vld [vmem:[#allocation8 + $0x198] sm:$0xff]
    %v204 = vld [vmem:[#allocation8 + $0x1a0] sm:$0xff]
    %v205 = vld [vmem:[#allocation8 + $0x1a8] sm:$0xff]
    %v206 = vld [vmem:[#allocation8 + $0x1b0] sm:$0xff]
    %v207 = vld [vmem:[#allocation8 + $0x1b8] sm:$0xff]
    %v208 = vld [vmem:[#allocation8 + $0x1c0] sm:$0xff]
    %v209 = vld [vmem:[#allocation8 + $0x1c8] sm:$0xff]
    %v210 = vld [vmem:[#allocation8 + $0x1d0] sm:$0xff]
    %v211 = vld [vmem:[#allocation8 + $0x1d8] sm:$0xff]
    %v212 = vld [vmem:[#allocation8 + $0x1e0] sm:$0xff]
    %v213 = vld [vmem:[#allocation8 + $0x1e8] sm:$0xff]
    %v214 = vld [vmem:[#allocation8 + $0x1f0] sm:$0xff]
    %v215 = vld [vmem:[#allocation8 + $0x1f8] sm:$0xff]
    %v216 = vld [vmem:[#allocation8 + $0x200] sm:$0xff]
    %v217 = vld [vmem:[#allocation8 + $0x208] sm:$0xff]
    %v218 = vld [vmem:[#allocation8 + $0x210] sm:$0xff]
    %v219 = vld [vmem:[#allocation8 + $0x218] sm:$0xff]
    %v220 = vld [vmem:[#allocation8 + $0x220] sm:$0xff]
    %v221 = vld [vmem:[#allocation8 + $0x228] sm:$0xff]
    %v222 = vld [vmem:[#allocation8 + $0x230] sm:$0xff]
    %v223 = vld [vmem:[#allocation8 + $0x238] sm:$0xff]
    %v224 = vld [vmem:[#allocation8 + $0x240] sm:$0xff]
    %v225 = vld [vmem:[#allocation8 + $0x248] sm:$0xff]
    %v226 = vld [vmem:[#allocation8 + $0x250] sm:$0xff]
    %v227 = vld [vmem:[#allocation8 + $0x258] sm:$0xff]
    %v228 = vld [vmem:[#allocation8 + $0x260] sm:$0xff]
    %v229 = vld [vmem:[#allocation8 + $0x268] sm:$0xff]
    %v230 = vld [vmem:[#allocation8 + $0x270] sm:$0xff]
    %v231 = vld [vmem:[#allocation8 + $0x278] sm:$0xff]
    %v232 = vld [vmem:[#allocation8 + $0x280] sm:$0xff]
    %v233 = vld [vmem:[#allocation8 + $0x288] sm:$0xff]
    %v234 = vld [vmem:[#allocation8 + $0x290] sm:$0xff]
    %v235 = vld [vmem:[#allocation8 + $0x298] sm:$0xff]
    %v236 = vld [vmem:[#allocation8 + $0x2a0] sm:$0xff]
    %v237 = vld [vmem:[#allocation8 + $0x2a8] sm:$0xff]
    %v238 = vld [vmem:[#allocation8 + $0x2b0] sm:$0xff]
    %v239 = vld [vmem:[#allocation8 + $0x2b8] sm:$0xff]
    %v240 = vld [vmem:[#allocation8 + $0x2c0] sm:$0xff]
    %v241 = vld [vmem:[#allocation8 + $0x2c8] sm:$0xff]
    %v242 = vld [vmem:[#allocation8 + $0x2d0] sm:$0xff]
    %v243 = vld [vmem:[#allocation8 + $0x2d8] sm:$0xff]
    %v244 = vld [vmem:[#allocation8 + $0x2e0] sm:$0xff]
    %v245 = vld [vmem:[#allocation8 + $0x2e8] sm:$0xff]
    %v246 = vld [vmem:[#allocation8 + $0x2f0] sm:$0xff]
    %v247 = vld [vmem:[#allocation8 + $0x2f8] sm:$0xff]
    %v248 = vld [vmem:[#allocation8 + $0x300] sm:$0xff]
    %v249 = vld [vmem:[#allocation8 + $0x308] sm:$0xff]
    %v250 = vld [vmem:[#allocation8 + $0x310] sm:$0xff]
    %v251 = vld [vmem:[#allocation8 + $0x318] sm:$0xff]
    %v252 = vld [vmem:[#allocation8 + $0x320] sm:$0xff]
    %v253 = vld [vmem:[#allocation8 + $0x328] sm:$0xff]
    %v254 = vld [vmem:[#allocation8 + $0x330] sm:$0xff]
    %v255 = vld [vmem:[#allocation8 + $0x338] sm:$0xff]
    %v256 = vld [vmem:[#allocation8 + $0x340] sm:$0xff]
    %v257 = vld [vmem:[#allocation8 + $0x348] sm:$0xff]
    %v258 = vld [vmem:[#allocation8 + $0x350] sm:$0xff]
    %v259 = vld [vmem:[#allocation8 + $0x358] sm:$0xff]
    %v260 = vld [vmem:[#allocation8 + $0x360] sm:$0xff]
    %v261 = vld [vmem:[#allocation8 + $0x368] sm:$0xff]
    %v262 = vld [vmem:[#allocation8 + $0x370] sm:$0xff]
    %v263 = vld [vmem:[#allocation8 + $0x378] sm:$0xff]
    %v264 = vld [vmem:[#allocation8 + $0x380] sm:$0xff]
    %v265 = vld [vmem:[#allocation8 + $0x388] sm:$0xff]
    %v266 = vld [vmem:[#allocation8 + $0x390] sm:$0xff]
    %v267 = vld [vmem:[#allocation8 + $0x398] sm:$0xff]
    %v268 = vld [vmem:[#allocation8 + $0x3a0] sm:$0xff]
    %v269 = vld [vmem:[#allocation8 + $0x3a8] sm:$0xff]
    %v270 = vld [vmem:[#allocation8 + $0x3b0] sm:$0xff]
    %v271 = vld [vmem:[#allocation8 + $0x3b8] sm:$0xff]
    %v272 = vld [vmem:[#allocation8 + $0x3c0] sm:$0xff]
    %v273 = vld [vmem:[#allocation8 + $0x3c8] sm:$0xff]
    %v274 = vld [vmem:[#allocation8 + $0x3d0] sm:$0xff]
    %v275 = vld [vmem:[#allocation8 + $0x3d8] sm:$0xff]
    %v276 = vld [vmem:[#allocation8 + $0x3e0] sm:$0xff]
    %v277 = vld [vmem:[#allocation8 + $0x3e8] sm:$0xff]
    %v278 = vld [vmem:[#allocation8 + $0x3f0] sm:$0xff]
    %v279 = vld [vmem:[#allocation8 + $0x3f8] sm:$0xff]
    %v280 = vld [vmem:[#allocation8 + $0x400] sm:$0xff]
    %v281 = vld [vmem:[#allocation8 + $0x408] sm:$0xff]
    %v282 = vld [vmem:[#allocation8 + $0x410] sm:$0xff]
    %v283 = vld [vmem:[#allocation8 + $0x418] sm:$0xff]
    %v284 = vld [vmem:[#allocation8 + $0x420] sm:$0xff]
    %v285 = vld [vmem:[#allocation8 + $0x428] sm:$0xff]
    %v286 = vld [vmem:[#allocation8 + $0x430] sm:$0xff]
    %v287 = vld [vmem:[#allocation8 + $0x438] sm:$0xff]
    %v288 = vld [vmem:[#allocation8 + $0x440] sm:$0xff]
    %v289 = vld [vmem:[#allocation8 + $0x448] sm:$0xff]
    %v290 = vld [vmem:[#allocation8 + $0x450] sm:$0xff]
    %v291 = vld [vmem:[#allocation8 + $0x458] sm:$0xff]
    %v292 = vld [vmem:[#allocation8 + $0x460] sm:$0xff]
    %v293 = vld [vmem:[#allocation8 + $0x468] sm:$0xff]
    %v294 = vld [vmem:[#allocation8 + $0x470] sm:$0xff]
    %v295 = vld [vmem:[#allocation8 + $0x478] sm:$0xff]
    %v296 = vld [vmem:[#allocation8 + $0x480] sm:$0xff]
    %v297 = vld [vmem:[#allocation8 + $0x488] sm:$0xff]
    %v298 = vld [vmem:[#allocation8 + $0x490] sm:$0xff]
    %v299 = vld [vmem:[#allocation8 + $0x498] sm:$0xff]
    %v300 = vld [vmem:[#allocation8 + $0x4a0] sm:$0xff]
    %v301 = vld [vmem:[#allocation8 + $0x4a8] sm:$0xff]
    %v302 = vld [vmem:[#allocation8 + $0x4b0] sm:$0xff]
    %v303 = vld [vmem:[#allocation8 + $0x4b8] sm:$0xff]
    %v304 = vld [vmem:[#allocation8 + $0x4c0] sm:$0xff]
    %v305 = vld [vmem:[#allocation8 + $0x4c8] sm:$0xff]
    %v306 = vld [vmem:[#allocation8 + $0x4d0] sm:$0xff]
    %v307 = vld [vmem:[#allocation8 + $0x4d8] sm:$0xff]
    %v308 = vld [vmem:[#allocation8 + $0x4e0] sm:$0xff]
    %v309 = vld [vmem:[#allocation8 + $0x4e8] sm:$0xff]
    %v310 = vld [vmem:[#allocation8 + $0x4f0] sm:$0xff]
    %v311 = vld [vmem:[#allocation8 + $0x4f8] sm:$0xff]
    %v312 = vld [vmem:[#allocation8 + $0x500] sm:$0xff]
    %v313 = vld [vmem:[#allocation8 + $0x508] sm:$0xff]
    %v314 = vld [vmem:[#allocation8 + $0x510] sm:$0xff]
    %v315 = vld [vmem:[#allocation8 + $0x518] sm:$0xff]
    %v316 = vld [vmem:[#allocation8 + $0x520] sm:$0xff]
    %v317 = vld [vmem:[#allocation8 + $0x528] sm:$0xff]
    %v318 = vld [vmem:[#allocation8 + $0x530] sm:$0xff]
    %v319 = vld [vmem:[#allocation8 + $0x538] sm:$0xff]
    %v320 = vld [vmem:[#allocation8 + $0x540] sm:$0xff]
    %v321 = vld [vmem:[#allocation8 + $0x548] sm:$0xff]
    %v322 = vld [vmem:[#allocation8 + $0x550] sm:$0xff]
    %v323 = vld [vmem:[#allocation8 + $0x558] sm:$0xff]
    %v324 = vld [vmem:[#allocation8 + $0x560] sm:$0xff]
    %v325 = vld [vmem:[#allocation8 + $0x568] sm:$0xff]
    %v326 = vld [vmem:[#allocation8 + $0x570] sm:$0xff]
    %v327 = vld [vmem:[#allocation8 + $0x578] sm:$0xff]
    %v328 = vld [vmem:[#allocation8 + $0x580] sm:$0xff]
    %v329 = vld [vmem:[#allocation8 + $0x588] sm:$0xff]
    %v330 = vld [vmem:[#allocation8 + $0x590] sm:$0xff]
    %v331 = vld [vmem:[#allocation8 + $0x598] sm:$0xff]
    %v332 = vld [vmem:[#allocation8 + $0x5a0] sm:$0xff]
    %v333 = vld [vmem:[#allocation8 + $0x5a8] sm:$0xff]
    %v334 = vld [vmem:[#allocation8 + $0x5b0] sm:$0xff]
    %v335 = vld [vmem:[#allocation8 + $0x5b8] sm:$0xff]
    %v336 = vld [vmem:[#allocation8 + $0x5c0] sm:$0xff]
    %v337 = vld [vmem:[#allocation8 + $0x5c8] sm:$0xff]
    %v338 = vld [vmem:[#allocation8 + $0x5d0] sm:$0xff]
    %v339 = vld [vmem:[#allocation8 + $0x5d8] sm:$0xff]
    %v340 = vld [vmem:[#allocation8 + $0x5e0] sm:$0xff]
    %v341 = vld [vmem:[#allocation8 + $0x5e8] sm:$0xff]
    %v342 = vld [vmem:[#allocation8 + $0x5f0] sm:$0xff]
    %v343 = vld [vmem:[#allocation8 + $0x5f8] sm:$0xff]
    %v344 = vld [vmem:[#allocation8 + $0x600] sm:$0xff]
    %v345 = vld [vmem:[#allocation8 + $0x608] sm:$0xff]
    %v346 = vld [vmem:[#allocation8 + $0x610] sm:$0xff]
    %v347 = vld [vmem:[#allocation8 + $0x618] sm:$0xff]
    %v348 = vld [vmem:[#allocation8 + $0x620] sm:$0xff]
    %v349 = vld [vmem:[#allocation8 + $0x628] sm:$0xff]
    %v350 = vld [vmem:[#allocation8 + $0x630] sm:$0xff]
    %v351 = vld [vmem:[#allocation8 + $0x638] sm:$0xff]
    %v352 = vld [vmem:[#allocation8 + $0x640] sm:$0xff]
    %v353 = vld [vmem:[#allocation8 + $0x648] sm:$0xff]
    %v354 = vld [vmem:[#allocation8 + $0x650] sm:$0xff]
    %v355 = vld [vmem:[#allocation8 + $0x658] sm:$0xff]
    %v356 = vld [vmem:[#allocation8 + $0x660] sm:$0xff]
    %v357 = vld [vmem:[#allocation8 + $0x668] sm:$0xff]
    %v358 = vld [vmem:[#allocation8 + $0x670] sm:$0xff]
    %v359 = vld [vmem:[#allocation8 + $0x678] sm:$0xff]
    %v360 = vld [vmem:[#allocation8 + $0x680] sm:$0xff]
    %v361 = vld [vmem:[#allocation8 + $0x688] sm:$0xff]
    %v362 = vld [vmem:[#allocation8 + $0x690] sm:$0xff]
    %v363 = vld [vmem:[#allocation8 + $0x698] sm:$0xff]
    %v364 = vld [vmem:[#allocation8 + $0x6a0] sm:$0xff]
    %v365 = vld [vmem:[#allocation8 + $0x6a8] sm:$0xff]
    %v366 = vld [vmem:[#allocation8 + $0x6b0] sm:$0xff]
    %v367 = vld [vmem:[#allocation8 + $0x6b8] sm:$0xff]
    %v368 = vld [vmem:[#allocation8 + $0x6c0] sm:$0xff]
    %v369 = vld [vmem:[#allocation8 + $0x6c8] sm:$0xff]
    %v370 = vld [vmem:[#allocation8 + $0x6d0] sm:$0xff]
    %v371 = vld [vmem:[#allocation8 + $0x6d8] sm:$0xff]
    %v372 = vld [vmem:[#allocation8 + $0x6e0] sm:$0xff]
    %v373 = vld [vmem:[#allocation8 + $0x6e8] sm:$0xff]
    %v374 = vld [vmem:[#allocation8 + $0x6f0] sm:$0xff]
    %v375 = vld [vmem:[#allocation8 + $0x6f8] sm:$0xff]
    %v376 = vld [vmem:[#allocation8 + $0x700] sm:$0xff]
    %v377 = vld [vmem:[#allocation8 + $0x708] sm:$0xff]
    %v378 = vld [vmem:[#allocation8 + $0x710] sm:$0xff]
    %v379 = vld [vmem:[#allocation8 + $0x718] sm:$0xff]
    %v380 = vld [vmem:[#allocation8 + $0x720] sm:$0xff]
    %v381 = vld [vmem:[#allocation8 + $0x728] sm:$0xff]
    %v382 = vld [vmem:[#allocation8 + $0x730] sm:$0xff]
    %v383 = vld [vmem:[#allocation8 + $0x738] sm:$0xff]
    %v384 = vld [vmem:[#allocation8 + $0x740] sm:$0xff]
    %v385 = vld [vmem:[#allocation8 + $0x748] sm:$0xff]
    %v386 = vld [vmem:[#allocation8 + $0x750] sm:$0xff]
    %v387 = vld [vmem:[#allocation8 + $0x758] sm:$0xff]
    %v388 = vld [vmem:[#allocation8 + $0x760] sm:$0xff]
    %v389 = vld [vmem:[#allocation8 + $0x768] sm:$0xff]
    %v390 = vld [vmem:[#allocation8 + $0x770] sm:$0xff]
    %v391 = vld [vmem:[#allocation8 + $0x778] sm:$0xff]
    %v392 = vld [vmem:[#allocation8 + $0x780] sm:$0xff]
    %v393 = vld [vmem:[#allocation8 + $0x788] sm:$0xff]
    %v394 = vld [vmem:[#allocation8 + $0x790] sm:$0xff]
    %v395 = vld [vmem:[#allocation8 + $0x798] sm:$0xff]
    %v396 = vld [vmem:[#allocation8 + $0x7a0] sm:$0xff]
    %v397 = vld [vmem:[#allocation8 + $0x7a8] sm:$0xff]
    %v398 = vld [vmem:[#allocation8 + $0x7b0] sm:$0xff]
    %v399 = vld [vmem:[#allocation8 + $0x7b8] sm:$0xff]
    %v400 = vld [vmem:[#allocation8 + $0x7c0] sm:$0xff]
    %v401 = vld [vmem:[#allocation8 + $0x7c8] sm:$0xff]
    %v402 = vld [vmem:[#allocation8 + $0x7d0] sm:$0xff]
    %v403 = vld [vmem:[#allocation8 + $0x7d8] sm:$0xff]
    %v404 = vld [vmem:[#allocation8 + $0x7e0] sm:$0xff]
    %v405 = vld [vmem:[#allocation8 + $0x7e8] sm:$0xff]
    %v406 = vld [vmem:[#allocation8 + $0x7f0] sm:$0xff]
    %v407 = vld [vmem:[#allocation8 + $0x7f8] sm:$0xff]
    %v408 = vld [vmem:[#allocation8 + $0x800] sm:$0xff]
    %v409 = vld [vmem:[#allocation8 + $0x808] sm:$0xff]
    %v410 = vld [vmem:[#allocation8 + $0x810] sm:$0xff]
    %v411 = vld [vmem:[#allocation8 + $0x818] sm:$0xff]
    %v412 = vld [vmem:[#allocation8 + $0x820] sm:$0xff]
    %v413 = vld [vmem:[#allocation8 + $0x828] sm:$0xff]
    %v414 = vld [vmem:[#allocation8 + $0x830] sm:$0xff]
    %v415 = vld [vmem:[#allocation8 + $0x838] sm:$0xff]
    %v416 = vld [vmem:[#allocation8 + $0x840] sm:$0xff]
    %v417 = vld [vmem:[#allocation8 + $0x848] sm:$0xff]
    %v418 = vld [vmem:[#allocation8 + $0x850] sm:$0xff]
    %v419 = vld [vmem:[#allocation8 + $0x858] sm:$0xff]
    %v420 = vld [vmem:[#allocation8 + $0x860] sm:$0xff]
    %v421 = vld [vmem:[#allocation8 + $0x868] sm:$0xff]
    %v422 = vld [vmem:[#allocation8 + $0x870] sm:$0xff]
    %v423 = vld [vmem:[#allocation8 + $0x878] sm:$0xff]
    %v424 = vld [vmem:[#allocation8 + $0x880] sm:$0xff]
    %v425 = vld [vmem:[#allocation8 + $0x888] sm:$0xff]
    %v426 = vld [vmem:[#allocation8 + $0x890] sm:$0xff]
    %v427 = vld [vmem:[#allocation8 + $0x898] sm:$0xff]
    %v428 = vld [vmem:[#allocation8 + $0x8a0] sm:$0xff]
    %v429 = vld [vmem:[#allocation8 + $0x8a8] sm:$0xff]
    %v430 = vld [vmem:[#allocation8 + $0x8b0] sm:$0xff]
    %v431 = vld [vmem:[#allocation8 + $0x8b8] sm:$0xff]
    %v432 = vld [vmem:[#allocation8 + $0x8c0] sm:$0xff]
    %v433 = vld [vmem:[#allocation8 + $0x8c8] sm:$0xff]
    %v434 = vld [vmem:[#allocation8 + $0x8d0] sm:$0xff]
    %v435 = vld [vmem:[#allocation8 + $0x8d8] sm:$0xff]
    %v436 = vld [vmem:[#allocation8 + $0x8e0] sm:$0xff]
    %v437 = vld [vmem:[#allocation8 + $0x8e8] sm:$0xff]
    %v438 = vld [vmem:[#allocation8 + $0x8f0] sm:$0xff]
    %v439 = vld [vmem:[#allocation8 + $0x8f8] sm:$0xff]
    %v440 = vld [vmem:[#allocation8 + $0x900] sm:$0xff]
    %v441 = vld [vmem:[#allocation8 + $0x908] sm:$0xff]
    %v442 = vld [vmem:[#allocation8 + $0x910] sm:$0xff]
    %v443 = vld [vmem:[#allocation8 + $0x918] sm:$0xff]
    %v444 = vld [vmem:[#allocation8 + $0x920] sm:$0xff]
    %v445 = vld [vmem:[#allocation8 + $0x928] sm:$0xff]
    %v446 = vld [vmem:[#allocation8 + $0x930] sm:$0xff]
    %v447 = vld [vmem:[#allocation8 + $0x938] sm:$0xff]
    %v448 = vld [vmem:[#allocation8 + $0x940] sm:$0xff]
    %v449 = vld [vmem:[#allocation8 + $0x948] sm:$0xff]
    %v450 = vld [vmem:[#allocation8 + $0x950] sm:$0xff]
    %v451 = vld [vmem:[#allocation8 + $0x958] sm:$0xff]
    %v452 = vld [vmem:[#allocation8 + $0x960] sm:$0xff]
    %v453 = vld [vmem:[#allocation8 + $0x968] sm:$0xff]
    %v454 = vld [vmem:[#allocation8 + $0x970] sm:$0xff]
    %v455 = vld [vmem:[#allocation8 + $0x978] sm:$0xff]
    %v456 = vld [vmem:[#allocation8 + $0x980] sm:$0xff]
    %v457 = vld [vmem:[#allocation8 + $0x988] sm:$0xff]
    %v458 = vld [vmem:[#allocation8 + $0x990] sm:$0xff]
    %v459 = vld [vmem:[#allocation8 + $0x998] sm:$0xff]
    %v460 = vld [vmem:[#allocation8 + $0x9a0] sm:$0xff]
    %v461 = vld [vmem:[#allocation8 + $0x9a8] sm:$0xff]
    %v462 = vld [vmem:[#allocation8 + $0x9b0] sm:$0xff]
    %v463 = vld [vmem:[#allocation8 + $0x9b8] sm:$0xff]
    %v464 = vld [vmem:[#allocation8 + $0x9c0] sm:$0xff]
    %v465 = vld [vmem:[#allocation8 + $0x9c8] sm:$0xff]
    %v466 = vld [vmem:[#allocation8 + $0x9d0] sm:$0xff]
    %v467 = vld [vmem:[#allocation8 + $0x9d8] sm:$0xff]
    %v468 = vld [vmem:[#allocation8 + $0x9e0] sm:$0xff]
    %v469 = vld [vmem:[#allocation8 + $0x9e8] sm:$0xff]
    %v470 = vld [vmem:[#allocation8 + $0x9f0] sm:$0xff]
    %v471 = vld [vmem:[#allocation8 + $0x9f8] sm:$0xff]
    %v472 = vld [vmem:[#allocation8 + $0xa00] sm:$0xff]
    %v473 = vld [vmem:[#allocation8 + $0xa08] sm:$0xff]
    %v474 = vld [vmem:[#allocation8 + $0xa10] sm:$0xff]
    %v475 = vld [vmem:[#allocation8 + $0xa18] sm:$0xff]
    %v476 = vld [vmem:[#allocation8 + $0xa20] sm:$0xff]
    %v477 = vld [vmem:[#allocation8 + $0xa28] sm:$0xff]
    %v478 = vld [vmem:[#allocation8 + $0xa30] sm:$0xff]
    %v479 = vld [vmem:[#allocation8 + $0xa38] sm:$0xff]
    %v480 = vld [vmem:[#allocation8 + $0xa40] sm:$0xff]
    %v481 = vld [vmem:[#allocation8 + $0xa48] sm:$0xff]
    %v482 = vld [vmem:[#allocation8 + $0xa50] sm:$0xff]
    %v483 = vld [vmem:[#allocation8 + $0xa58] sm:$0xff]
    %v484 = vld [vmem:[#allocation8 + $0xa60] sm:$0xff]
    %v485 = vld [vmem:[#allocation8 + $0xa68] sm:$0xff]
    %v486 = vld [vmem:[#allocation8 + $0xa70] sm:$0xff]
    %v487 = vld [vmem:[#allocation8 + $0xa78] sm:$0xff]
    %v488 = vld [vmem:[#allocation8 + $0xa80] sm:$0xff]
    %v489 = vld [vmem:[#allocation8 + $0xa88] sm:$0xff]
    %v490 = vld [vmem:[#allocation8 + $0xa90] sm:$0xff]
    %v491 = vld [vmem:[#allocation8 + $0xa98] sm:$0xff]
    %v492 = vld [vmem:[#allocation8 + $0xaa0] sm:$0xff]
    %v493 = vld [vmem:[#allocation8 + $0xaa8] sm:$0xff]
    %v494 = vld [vmem:[#allocation8 + $0xab0] sm:$0xff]
    %v495 = vld [vmem:[#allocation8 + $0xab8] sm:$0xff]
    %v496 = vld [vmem:[#allocation8 + $0xac0] sm:$0xff]
    %v497 = vld [vmem:[#allocation8 + $0xac8] sm:$0xff]
    %v498 = vld [vmem:[#allocation8 + $0xad0] sm:$0xff]
    %v499 = vld [vmem:[#allocation8 + $0xad8] sm:$0xff]
    %v500 = vld [vmem:[#allocation8 + $0xae0] sm:$0xff]
    %v501 = vld [vmem:[#allocation8 + $0xae8] sm:$0xff]
    %v502 = vld [vmem:[#allocation8 + $0xaf0] sm:$0xff]
    %v503 = vld [vmem:[#allocation8 + $0xaf8] sm:$0xff]
    %v504 = vld [vmem:[#allocation8 + $0xb00] sm:$0xff]
    %v505 = vld [vmem:[#allocation8 + $0xb08] sm:$0xff]
    %v506 = vld [vmem:[#allocation8 + $0xb10] sm:$0xff]
    %v507 = vld [vmem:[#allocation8 + $0xb18] sm:$0xff]
    %v508 = vld [vmem:[#allocation8 + $0xb20] sm:$0xff]
    %v509 = vld [vmem:[#allocation8 + $0xb28] sm:$0xff]
    %v510 = vld [vmem:[#allocation8 + $0xb30] sm:$0xff]
    %v511 = vld [vmem:[#allocation8 + $0xb38] sm:$0xff]
    %v512 = vld [vmem:[#allocation8 + $0xb40] sm:$0xff]
    %v513 = vld [vmem:[#allocation8 + $0xb48] sm:$0xff]
    %v514 = vld [vmem:[#allocation8 + $0xb50] sm:$0xff]
    %v515 = vld [vmem:[#allocation8 + $0xb58] sm:$0xff]
    %v516 = vld [vmem:[#allocation8 + $0xb60] sm:$0xff]
    %v517 = vld [vmem:[#allocation8 + $0xb68] sm:$0xff]
    %v518 = vld [vmem:[#allocation8 + $0xb70] sm:$0xff]
    %v519 = vld [vmem:[#allocation8 + $0xb78] sm:$0xff]
    %v520 = vld [vmem:[#allocation8 + $0xb80] sm:$0xff]
    %v521 = vld [vmem:[#allocation8 + $0xb88] sm:$0xff]
    %v522 = vld [vmem:[#allocation8 + $0xb90] sm:$0xff]
    %v523 = vld [vmem:[#allocation8 + $0xb98] sm:$0xff]
    %v524 = vld [vmem:[#allocation8 + $0xba0] sm:$0xff]
    %v525 = vld [vmem:[#allocation8 + $0xba8] sm:$0xff]
    %v526 = vld [vmem:[#allocation8 + $0xbb0] sm:$0xff]
    %v527 = vld [vmem:[#allocation8 + $0xbb8] sm:$0xff]
    %v528 = vld [vmem:[#allocation8 + $0xbc0] sm:$0xff]
    %v529 = vld [vmem:[#allocation8 + $0xbc8] sm:$0xff]
    %v530 = vld [vmem:[#allocation8 + $0xbd0] sm:$0xff]
    %v531 = vld [vmem:[#allocation8 + $0xbd8] sm:$0xff]
    %v532 = vld [vmem:[#allocation8 + $0xbe0] sm:$0xff]
    %v533 = vld [vmem:[#allocation8 + $0xbe8] sm:$0xff]
    %v534 = vld [vmem:[#allocation8 + $0xbf0] sm:$0xff]
    %v535 = vld [vmem:[#allocation8 + $0xbf8] sm:$0xff]
    %v536 = vld [vmem:[#allocation8 + $0xc00] sm:$0xff]
    %v537 = vld [vmem:[#allocation8 + $0xc08] sm:$0xff]
    %v538 = vld [vmem:[#allocation8 + $0xc10] sm:$0xff]
    %v539 = vld [vmem:[#allocation8 + $0xc18] sm:$0xff]
    %v540 = vld [vmem:[#allocation8 + $0xc20] sm:$0xff]
    %v541 = vld [vmem:[#allocation8 + $0xc28] sm:$0xff]
    %v542 = vld [vmem:[#allocation8 + $0xc30] sm:$0xff]
    %v543 = vld [vmem:[#allocation8 + $0xc38] sm:$0xff]
    %v544 = vld [vmem:[#allocation8 + $0xc40] sm:$0xff]
    %v545 = vld [vmem:[#allocation8 + $0xc48] sm:$0xff]
    %v546 = vld [vmem:[#allocation8 + $0xc50] sm:$0xff]
    %v547 = vld [vmem:[#allocation8 + $0xc58] sm:$0xff]
    %v548 = vld [vmem:[#allocation8 + $0xc60] sm:$0xff]
    %v549 = vld [vmem:[#allocation8 + $0xc68] sm:$0xff]
    %v550 = vld [vmem:[#allocation8 + $0xc70] sm:$0xff]
    %v551 = vld [vmem:[#allocation8 + $0xc78] sm:$0xff]
    %v552 = vld [vmem:[#allocation8 + $0xc80] sm:$0xff]
    %v553 = vld [vmem:[#allocation8 + $0xc88] sm:$0xff]
    %v554 = vld [vmem:[#allocation8 + $0xc90] sm:$0xff]
    %v555 = vld [vmem:[#allocation8 + $0xc98] sm:$0xff]
    %v556 = vld [vmem:[#allocation8 + $0xca0] sm:$0xff]
    %v557 = vld [vmem:[#allocation8 + $0xca8] sm:$0xff]
    %v558 = vld [vmem:[#allocation8 + $0xcb0] sm:$0xff]
    %v559 = vld [vmem:[#allocation8 + $0xcb8] sm:$0xff]
    %v560 = vld [vmem:[#allocation8 + $0xcc0] sm:$0xff]
    %v561 = vld [vmem:[#allocation8 + $0xcc8] sm:$0xff]
    %v562 = vld [vmem:[#allocation8 + $0xcd0] sm:$0xff]
    %v563 = vld [vmem:[#allocation8 + $0xcd8] sm:$0xff]
    %v564 = vld [vmem:[#allocation8 + $0xce0] sm:$0xff]
    %v565 = vld [vmem:[#allocation8 + $0xce8] sm:$0xff]
    %v566 = vld [vmem:[#allocation8 + $0xcf0] sm:$0xff]
    %v567 = vld [vmem:[#allocation8 + $0xcf8] sm:$0xff]
    %v568 = vld [vmem:[#allocation8 + $0xd00] sm:$0xff]
    %v569 = vld [vmem:[#allocation8 + $0xd08] sm:$0xff]
    %v570 = vld [vmem:[#allocation8 + $0xd10] sm:$0xff]
    %v571 = vld [vmem:[#allocation8 + $0xd18] sm:$0xff]
    %v572 = vld [vmem:[#allocation8 + $0xd20] sm:$0xff]
    %v573 = vld [vmem:[#allocation8 + $0xd28] sm:$0xff]
    %v574 = vld [vmem:[#allocation8 + $0xd30] sm:$0xff]
    %v575 = vld [vmem:[#allocation8 + $0xd38] sm:$0xff]
    %v576 = vld [vmem:[#allocation8 + $0xd40] sm:$0xff]
    %v577 = vld [vmem:[#allocation8 + $0xd48] sm:$0xff]
    %v578 = vld [vmem:[#allocation8 + $0xd50] sm:$0xff]
    %v579 = vld [vmem:[#allocation8 + $0xd58] sm:$0xff]
    %v580 = vld [vmem:[#allocation8 + $0xd60] sm:$0xff]
    %v581 = vld [vmem:[#allocation8 + $0xd68] sm:$0xff]
    %v582 = vld [vmem:[#allocation8 + $0xd70] sm:$0xff]
    %v583 = vld [vmem:[#allocation8 + $0xd78] sm:$0xff]
    %v584 = vld [vmem:[#allocation8 + $0xd80] sm:$0xff]
    %v585 = vld [vmem:[#allocation8 + $0xd88] sm:$0xff]
    %v586 = vld [vmem:[#allocation8 + $0xd90] sm:$0xff]
    %v587 = vld [vmem:[#allocation8 + $0xd98] sm:$0xff]
    %v588 = vld [vmem:[#allocation8 + $0xda0] sm:$0xff]
    %v589 = vld [vmem:[#allocation8 + $0xda8] sm:$0xff]
    %v590 = vld [vmem:[#allocation8 + $0xdb0] sm:$0xff]
    %v591 = vld [vmem:[#allocation8 + $0xdb8] sm:$0xff]
    %v592 = vld [vmem:[#allocation8 + $0xdc0] sm:$0xff]
    %v593 = vld [vmem:[#allocation8 + $0xdc8] sm:$0xff]
    %v594 = vld [vmem:[#allocation8 + $0xdd0] sm:$0xff]
    %v595 = vld [vmem:[#allocation8 + $0xdd8] sm:$0xff]
    %v596 = vld [vmem:[#allocation8 + $0xde0] sm:$0xff]
    %v597 = vld [vmem:[#allocation8 + $0xde8] sm:$0xff]
    %v598 = vld [vmem:[#allocation8 + $0xdf0] sm:$0xff]
    %v599 = vld [vmem:[#allocation8 + $0xdf8] sm:$0xff]
    %v600 = vld [vmem:[#allocation8 + $0xe00] sm:$0xff]
    %v601 = vld [vmem:[#allocation8 + $0xe08] sm:$0xff]
    %v602 = vld [vmem:[#allocation8 + $0xe10] sm:$0xff]
    %v603 = vld [vmem:[#allocation8 + $0xe18] sm:$0xff]
    %v604 = vld [vmem:[#allocation8 + $0xe20] sm:$0xff]
    %v605 = vld [vmem:[#allocation8 + $0xe28] sm:$0xff]
    %v606 = vld [vmem:[#allocation8 + $0xe30] sm:$0xff]
    %v607 = vld [vmem:[#allocation8 + $0xe38] sm:$0xff]
    %v608 = vld [vmem:[#allocation8 + $0xe40] sm:$0xff]
    %v609 = vld [vmem:[#allocation8 + $0xe48] sm:$0xff]
    %v610 = vld [vmem:[#allocation8 + $0xe50] sm:$0xff]
    %v611 = vld [vmem:[#allocation8 + $0xe58] sm:$0xff]
    %v612 = vld [vmem:[#allocation8 + $0xe60] sm:$0xff]
    %v613 = vld [vmem:[#allocation8 + $0xe68] sm:$0xff]
    %v614 = vld [vmem:[#allocation8 + $0xe70] sm:$0xff]
    %v615 = vld [vmem:[#allocation8 + $0xe78] sm:$0xff]
    %v616 = vld [vmem:[#allocation8 + $0xe80] sm:$0xff]
    %v617 = vld [vmem:[#allocation8 + $0xe88] sm:$0xff]
    %v618 = vld [vmem:[#allocation8 + $0xe90] sm:$0xff]
    %v619 = vld [vmem:[#allocation8 + $0xe98] sm:$0xff]
    %v620 = vld [vmem:[#allocation8 + $0xea0] sm:$0xff]
    %v621 = vld [vmem:[#allocation8 + $0xea8] sm:$0xff]
    %v622 = vld [vmem:[#allocation8 + $0xeb0] sm:$0xff]
    %v623 = vld [vmem:[#allocation8 + $0xeb8] sm:$0xff]
    %v624 = vld [vmem:[#allocation8 + $0xec0] sm:$0xff]
    %v625 = vld [vmem:[#allocation8 + $0xec8] sm:$0xff]
    %v626 = vld [vmem:[#allocation8 + $0xed0] sm:$0xff]
    %v627 = vld [vmem:[#allocation8 + $0xed8] sm:$0xff]
    %v628 = vld [vmem:[#allocation8 + $0xee0] sm:$0xff]
    %v629 = vld [vmem:[#allocation8 + $0xee8] sm:$0xff]
    %v630 = vld [vmem:[#allocation8 + $0xef0] sm:$0xff]
    %v631 = vld [vmem:[#allocation8 + $0xef8] sm:$0xff]
    %v632 = vld [vmem:[#allocation8 + $0xf00] sm:$0xff]
    %v633 = vld [vmem:[#allocation8 + $0xf08] sm:$0xff]
    %v634 = vld [vmem:[#allocation8 + $0xf10] sm:$0xff]
    %v635 = vld [vmem:[#allocation8 + $0xf18] sm:$0xff]
    %v636 = vld [vmem:[#allocation8 + $0xf20] sm:$0xff]
    %v637 = vld [vmem:[#allocation8 + $0xf28] sm:$0xff]
    %v638 = vld [vmem:[#allocation8 + $0xf30] sm:$0xff]
    %v639 = vld [vmem:[#allocation8 + $0xf38] sm:$0xff]
    %v640 = vld [vmem:[#allocation8 + $0xf40] sm:$0xff]
    %v641 = vld [vmem:[#allocation8 + $0xf48] sm:$0xff]
    %v642 = vld [vmem:[#allocation8 + $0xf50] sm:$0xff]
    %v643 = vld [vmem:[#allocation8 + $0xf58] sm:$0xff]
    %v644 = vld [vmem:[#allocation8 + $0xf60] sm:$0xff]
    %v645 = vld [vmem:[#allocation8 + $0xf68] sm:$0xff]
    %v646 = vld [vmem:[#allocation8 + $0xf70] sm:$0xff]
    %v647 = vld [vmem:[#allocation8 + $0xf78] sm:$0xff]
    %v648 = vld [vmem:[#allocation8 + $0xf80] sm:$0xff]
    %v649 = vld [vmem:[#allocation8 + $0xf88] sm:$0xff]
    %v650 = vld [vmem:[#allocation8 + $0xf90] sm:$0xff]
    %v651 = vld [vmem:[#allocation8 + $0xf98] sm:$0xff]
    %v652 = vld [vmem:[#allocation8 + $0xfa0] sm:$0xff]
    %v653 = vld [vmem:[#allocation8 + $0xfa8] sm:$0xff]
    %v654 = vld [vmem:[#allocation8 + $0xfb0] sm:$0xff]
    %v655 = vld [vmem:[#allocation8 + $0xfb8] sm:$0xff]
    %v656 = vld [vmem:[#allocation8 + $0xfc0] sm:$0xff]
    %v657 = vld [vmem:[#allocation8 + $0xfc8] sm:$0xff]
    %v658 = vld [vmem:[#allocation8 + $0xfd0] sm:$0xff]
    %v659 = vld [vmem:[#allocation8 + $0xfd8] sm:$0xff]
    %v660 = vld [vmem:[#allocation8 + $0xfe0] sm:$0xff]
    %v661 = vld [vmem:[#allocation8 + $0xfe8] sm:$0xff]
    %v662 = vld [vmem:[#allocation8 + $0xff0] sm:$0xff]
    %v663 = vld [vmem:[#allocation8 + $0xff8] sm:$0xff]
    %v664 = vld [vmem:[#allocation5] sm:$0xff]
    %v665 = vld [vmem:[#allocation5 + $0x8] sm:$0xff]
    %v666 = vld [vmem:[#allocation10] sm:$0xff]
    %v667 = vld [vmem:[#allocation10 + $0x8] sm:$0xff]
    %v668 = vld [vmem:[#allocation10 + $0x10] sm:$0xff]
    %v669 = vld [vmem:[#allocation10 + $0x18] sm:$0xff]
    %v670 = vld [vmem:[#allocation10 + $0x20] sm:$0xff]
    %v671 = vld [vmem:[#allocation10 + $0x28] sm:$0xff]
    %v672 = vld [vmem:[#allocation10 + $0x30] sm:$0xff]
    %v673 = vld [vmem:[#allocation10 + $0x38] sm:$0xff]
    %v674 = vld [vmem:[#allocation10 + $0x40] sm:$0xff]
    %v675 = vld [vmem:[#allocation10 + $0x48] sm:$0xff]
    %v676 = vld [vmem:[#allocation10 + $0x50] sm:$0xff]
    %v677 = vld [vmem:[#allocation10 + $0x58] sm:$0xff]
    %v678 = vld [vmem:[#allocation10 + $0x60] sm:$0xff]
    %v679 = vld [vmem:[#allocation10 + $0x68] sm:$0xff]
    %v680 = vld [vmem:[#allocation10 + $0x70] sm:$0x7f]
    %v681 = vld [vmem:[#allocation10 + $0x78] sm:$0x7f]
    %vm682 = vcmask 515072
    %v684 = vsel %vm682, %v664, 0
    %v687 = vsel %vm682, %v665, 0
    %vm689 = vcmask 1046528
    %v691 = vsel %vm689, %v680, 0
    %v694 = vsel %vm689, %v681, 0
    %696 = vmatprep.subr.mxu0 %v667
    %697 = vmatpush1.msra.mxu0 %v666
    %698 = vmatprep.subr.mxu0 %v669
    %699 = vmatpush1.msra.mxu0 %v668
    %700 = vmatprep.subr.mxu0 %v671
    %701 = vmatpush1.msra.mxu0 %v670
    %702 = vmatprep.subr.mxu0 %v673
    %703 = vmatpush1.msra.mxu0 %v672
    %704 = vmatprep.subr.mxu0 %v675
    %705 = vmatpush1.msra.mxu0 %v674
    %706 = vmatprep.subr.mxu0 %v677
    %707 = vmatpush1.msra.mxu0 %v676
    %708 = vmatprep.subr.mxu0 %v679
    %709 = vmatpush1.msra.mxu0 %v678
    %710 = vmatprep.subr.mxu0 %v694
    %711 = vmatpush1.msra.mxu0 %v691
    %712 = vmatprep.subr.mxu0 0.0
    %713 = vmatpush1.msra.mxu0 0.0
    %714 = vmatprep.subr.mxu0 0.0
    %715 = vmatpush1.msra.mxu0 0.0
    %716 = vmatprep.subr.mxu0 0.0
    %717 = vmatpush1.msra.mxu0 0.0
    %718 = vmatprep.subr.mxu0 0.0
    %719 = vmatpush1.msra.mxu0 0.0
    %720 = vmatprep.subr.mxu0 0.0
    %721 = vmatpush1.msra.mxu0 0.0
    %722 = vmatprep.subr.mxu0 0.0
    %723 = vmatpush1.msra.mxu0 0.0
    %724 = vmatprep.subr.mxu0 0.0
    %725 = vmatpush1.msra.mxu0 0.0
    %726 = vmatprep.subr.mxu0 0.0
    %727 = vmatpush1.msra.mxu0 0.0
    %728 = vmatprep.subr.mxu0 0.0
    %729 = vmatpush1.msra.mxu0 0.0
    %730 = vmatprep.subr.mxu0 0.0
    %731 = vmatpush1.msra.mxu0 0.0
    %732 = vmatprep.subr.mxu0 0.0
    %733 = vmatpush1.msra.mxu0 0.0
    %734 = vmatprep.subr.mxu0 0.0
    %735 = vmatpush1.msra.mxu0 0.0
    %736 = vmatprep.subr.mxu0 0.0
    %737 = vmatpush1.msra.mxu0 0.0
    %738 = vmatprep.subr.mxu0 0.0
    %739 = vmatpush1.msra.mxu0 0.0
    %740 = vmatprep.subr.mxu0 0.0
    %741 = vmatpush1.msra.mxu0 0.0
    %742 = vmatprep.subr.mxu0 0.0
    %743 = vmatpush1.msra.mxu0 0.0
    %744 = vmatprep.subr.mxu0 0.0
    %745 = vmatpush1.msra.mxu0 0.0
    %746 = vmatprep.subr.mxu0 0.0
    %747 = vmatpush1.msra.mxu0 0.0
    %748 = vmatprep.subr.mxu0 0.0
    %749 = vmatpush1.msra.mxu0 0.0
    %750 = vmatprep.subr.mxu0 0.0
    %751 = vmatpush1.msra.mxu0 0.0
    %752 = vmatprep.subr.mxu0 0.0
    %753 = vmatpush1.msra.mxu0 0.0
    %754 = vmatprep.subr.mxu0 0.0
    %755 = vmatpush1.msra.mxu0 0.0
    %756 = vmatprep.subr.mxu0 0.0
    %757 = vmatpush1.msra.mxu0 0.0
    %758 = vmatprep.subr.mxu0 0.0
    %759 = vmatpush1.msra.mxu0 0.0
    %760 = vmatprep.mubr.f32.mxu0 0.0
    %761 = vmatmul.mubr.f32.gmra.mrb[0].mxu0 %v684
    %v762 = vpop.f32.mrb[0].mxu0
    %v763 = vadd.f32 0.0, %v762
    %v764 = vpop.f32.mrb[0].mxu0
    %v765 = vadd.f32 0.0, %v764
    %766 = vmatprep.mubr.f32.mxu0 0.0
    %767 = vmatmul.mubr.f32.gmra.mrb[0].mxu0 %v687
    %v768 = vpop.f32.mrb[0].mxu0
    %v769 = vadd.f32 0.0, %v768
    %v770 = vpop.f32.mrb[0].mxu0
    %v771 = vadd.f32 0.0, %v770
    %772 = vdwg.mxu0
    %773 = vmatprep.subr.mxu0 %v153
    %774 = vmatpush1.msra.mxu0 %v152
    %775 = vmatprep.subr.mxu0 %v155
    %776 = vmatpush1.msra.mxu0 %v154
    %777 = vmatprep.subr.mxu0 %v157
    %778 = vmatpush1.msra.mxu0 %v156
    %779 = vmatprep.subr.mxu0 %v159
    %780 = vmatpush1.msra.mxu0 %v158
    %781 = vmatprep.subr.mxu0 %v161
    %782 = vmatpush1.msra.mxu0 %v160
    %783 = vmatprep.subr.mxu0 %v163
    %784 = vmatpush1.msra.mxu0 %v162
    %785 = vmatprep.subr.mxu0 %v165
    %786 = vmatpush1.msra.mxu0 %v164
    %787 = vmatprep.subr.mxu0 %v167
    %788 = vmatpush1.msra.mxu0 %v166
    %789 = vmatprep.subr.mxu0 %v169
    %790 = vmatpush1.msra.mxu0 %v168
    %791 = vmatprep.subr.mxu0 %v171
    %792 = vmatpush1.msra.mxu0 %v170
    %793 = vmatprep.subr.mxu0 %v173
    %794 = vmatpush1.msra.mxu0 %v172
    %795 = vmatprep.subr.mxu0 %v175
    %796 = vmatpush1.msra.mxu0 %v174
    %797 = vmatprep.subr.mxu0 %v177
    %798 = vmatpush1.msra.mxu0 %v176
    %799 = vmatprep.subr.mxu0 %v179
    %800 = vmatpush1.msra.mxu0 %v178
    %801 = vmatprep.subr.mxu0 %v181
    %802 = vmatpush1.msra.mxu0 %v180
    %803 = vmatprep.subr.mxu0 %v183
    %804 = vmatpush1.msra.mxu0 %v182
    %805 = vmatprep.subr.mxu0 %v185
    %806 = vmatpush1.msra.mxu0 %v184
    %807 = vmatprep.subr.mxu0 %v187
    %808 = vmatpush1.msra.mxu0 %v186
    %809 = vmatprep.subr.mxu0 %v189
    %810 = vmatpush1.msra.mxu0 %v188
    %811 = vmatprep.subr.mxu0 %v191
    %812 = vmatpush1.msra.mxu0 %v190
    %813 = vmatprep.subr.mxu0 %v193
    %814 = vmatpush1.msra.mxu0 %v192
    %815 = vmatprep.subr.mxu0 %v195
    %816 = vmatpush1.msra.mxu0 %v194
    %817 = vmatprep.subr.mxu0 %v197
    %818 = vmatpush1.msra.mxu0 %v196
    %819 = vmatprep.subr.mxu0 %v199
    %820 = vmatpush1.msra.mxu0 %v198
    %821 = vmatprep.subr.mxu0 %v201
    %822 = vmatpush1.msra.mxu0 %v200
    %823 = vmatprep.subr.mxu0 %v203
    %824 = vmatpush1.msra.mxu0 %v202
    %825 = vmatprep.subr.mxu0 %v205
    %826 = vmatpush1.msra.mxu0 %v204
    %827 = vmatprep.subr.mxu0 %v207
    %828 = vmatpush1.msra.mxu0 %v206
    %829 = vmatprep.subr.mxu0 %v209
    %830 = vmatpush1.msra.mxu0 %v208
    %831 = vmatprep.subr.mxu0 %v211
    %832 = vmatpush1.msra.mxu0 %v210
    %833 = vmatprep.subr.mxu0 %v213
    %834 = vmatpush1.msra.mxu0 %v212
    %835 = vmatprep.subr.mxu0 %v215
    %836 = vmatpush1.msra.mxu0 %v214
    %837 = vmatprep.mubr.f32.mxu0 %v121
    %838 = vmatmul.mubr.f32.gmra.mrb[0].mxu0 %v120
    %v839 = vpop.f32.mrb[0].mxu0
    %v840 = vadd.f32 %v763, %v839
    %v841 = vpop.f32.mrb[0].mxu0
    %v842 = vadd.f32 %v765, %v841
    %843 = vmatprep.mubr.f32.mxu0 %v137
    %844 = vmatmul.mubr.f32.gmra.mrb[0].mxu0 %v136
    %v845 = vpop.f32.mrb[0].mxu0
    %v846 = vadd.f32 %v769, %v845
    %v847 = vpop.f32.mrb[0].mxu0
    %v848 = vadd.f32 %v771, %v847
    %849 = vdwg.mxu0
    %850 = vmatprep.subr.mxu0 %v217
    %851 = vmatpush1.msra.mxu0 %v216
    %852 = vmatprep.subr.mxu0 %v219
    %853 = vmatpush1.msra.mxu0 %v218
    %854 = vmatprep.subr.mxu0 %v221
    %855 = vmatpush1.msra.mxu0 %v220
    %856 = vmatprep.subr.mxu0 %v223
    %857 = vmatpush1.msra.mxu0 %v222
    %858 = vmatprep.subr.mxu0 %v225
    %859 = vmatpush1.msra.mxu0 %v224
    %860 = vmatprep.subr.mxu0 %v227
    %861 = vmatpush1.msra.mxu0 %v226
    %862 = vmatprep.subr.mxu0 %v229
    %863 = vmatpush1.msra.mxu0 %v228
    %864 = vmatprep.subr.mxu0 %v231
    %865 = vmatpush1.msra.mxu0 %v230
    %866 = vmatprep.subr.mxu0 %v233
    %867 = vmatpush1.msra.mxu0 %v232
    %868 = vmatprep.subr.mxu0 %v235
    %869 = vmatpush1.msra.mxu0 %v234
    %870 = vmatprep.subr.mxu0 %v237
    %871 = vmatpush1.msra.mxu0 %v236
    %872 = vmatprep.subr.mxu0 %v239
    %873 = vmatpush1.msra.mxu0 %v238
    %874 = vmatprep.subr.mxu0 %v241
    %875 = vmatpush1.msra.mxu0 %v240
    %876 = vmatprep.subr.mxu0 %v243
    %877 = vmatpush1.msra.mxu0 %v242
    %878 = vmatprep.subr.mxu0 %v245
    %879 = vmatpush1.msra.mxu0 %v244
    %880 = vmatprep.subr.mxu0 %v247
    %881 = vmatpush1.msra.mxu0 %v246
    %882 = vmatprep.subr.mxu0 %v249
    %883 = vmatpush1.msra.mxu0 %v248
    %884 = vmatprep.subr.mxu0 %v251
    %885 = vmatpush1.msra.mxu0 %v250
    %886 = vmatprep.subr.mxu0 %v253
    %887 = vmatpush1.msra.mxu0 %v252
    %888 = vmatprep.subr.mxu0 %v255
    %889 = vmatpush1.msra.mxu0 %v254
    %890 = vmatprep.subr.mxu0 %v257
    %891 = vmatpush1.msra.mxu0 %v256
    %892 = vmatprep.subr.mxu0 %v259
    %893 = vmatpush1.msra.mxu0 %v258
    %894 = vmatprep.subr.mxu0 %v261
    %895 = vmatpush1.msra.mxu0 %v260
    %896 = vmatprep.subr.mxu0 %v263
    %897 = vmatpush1.msra.mxu0 %v262
    %898 = vmatprep.subr.mxu0 %v265
    %899 = vmatpush1.msra.mxu0 %v264
    %900 = vmatprep.subr.mxu0 %v267
    %901 = vmatpush1.msra.mxu0 %v266
    %902 = vmatprep.subr.mxu0 %v269
    %903 = vmatpush1.msra.mxu0 %v268
    %904 = vmatprep.subr.mxu0 %v271
    %905 = vmatpush1.msra.mxu0 %v270
    %906 = vmatprep.subr.mxu0 %v273
    %907 = vmatpush1.msra.mxu0 %v272
    %908 = vmatprep.subr.mxu0 %v275
    %909 = vmatpush1.msra.mxu0 %v274
    %910 = vmatprep.subr.mxu0 %v277
    %911 = vmatpush1.msra.mxu0 %v276
    %912 = vmatprep.subr.mxu0 %v279
    %913 = vmatpush1.msra.mxu0 %v278
    %914 = vmatprep.mubr.f32.mxu0 %v123
    %915 = vmatmul.mubr.f32.gmra.mrb[0].mxu0 %v122
    %v916 = vpop.f32.mrb[0].mxu0
    %v917 = vadd.f32 %v840, %v916
    %v918 = vpop.f32.mrb[0].mxu0
    %v919 = vadd.f32 %v842, %v918
    %920 = vmatprep.mubr.f32.mxu0 %v139
    %921 = vmatmul.mubr.f32.gmra.mrb[0].mxu0 %v138
    %v922 = vpop.f32.mrb[0].mxu0
    %v923 = vadd.f32 %v846, %v922
    %v924 = vpop.f32.mrb[0].mxu0
    %v925 = vadd.f32 %v848, %v924
    %926 = vdwg.mxu0
    %927 = vmatprep.subr.mxu0 %v281
    %928 = vmatpush1.msra.mxu0 %v280
    %929 = vmatprep.subr.mxu0 %v283
    %930 = vmatpush1.msra.mxu0 %v282
    %931 = vmatprep.subr.mxu0 %v285
    %932 = vmatpush1.msra.mxu0 %v284
    %933 = vmatprep.subr.mxu0 %v287
    %934 = vmatpush1.msra.mxu0 %v286
    %935 = vmatprep.subr.mxu0 %v289
    %936 = vmatpush1.msra.mxu0 %v288
    %937 = vmatprep.subr.mxu0 %v291
    %938 = vmatpush1.msra.mxu0 %v290
    %939 = vmatprep.subr.mxu0 %v293
    %940 = vmatpush1.msra.mxu0 %v292
    %941 = vmatprep.subr.mxu0 %v295
    %942 = vmatpush1.msra.mxu0 %v294
    %943 = vmatprep.subr.mxu0 %v297
    %944 = vmatpush1.msra.mxu0 %v296
    %945 = vmatprep.subr.mxu0 %v299
    %946 = vmatpush1.msra.mxu0 %v298
    %947 = vmatprep.subr.mxu0 %v301
    %948 = vmatpush1.msra.mxu0 %v300
    %949 = vmatprep.subr.mxu0 %v303
    %950 = vmatpush1.msra.mxu0 %v302
    %951 = vmatprep.subr.mxu0 %v305
    %952 = vmatpush1.msra.mxu0 %v304
    %953 = vmatprep.subr.mxu0 %v307
    %954 = vmatpush1.msra.mxu0 %v306
    %955 = vmatprep.subr.mxu0 %v309
    %956 = vmatpush1.msra.mxu0 %v308
    %957 = vmatprep.subr.mxu0 %v311
    %958 = vmatpush1.msra.mxu0 %v310
    %959 = vmatprep.subr.mxu0 %v313
    %960 = vmatpush1.msra.mxu0 %v312
    %961 = vmatprep.subr.mxu0 %v315
    %962 = vmatpush1.msra.mxu0 %v314
    %963 = vmatprep.subr.mxu0 %v317
    %964 = vmatpush1.msra.mxu0 %v316
    %965 = vmatprep.subr.mxu0 %v319
    %966 = vmatpush1.msra.mxu0 %v318
    %967 = vmatprep.subr.mxu0 %v321
    %968 = vmatpush1.msra.mxu0 %v320
    %969 = vmatprep.subr.mxu0 %v323
    %970 = vmatpush1.msra.mxu0 %v322
    %971 = vmatprep.subr.mxu0 %v325
    %972 = vmatpush1.msra.mxu0 %v324
    %973 = vmatprep.subr.mxu0 %v327
    %974 = vmatpush1.msra.mxu0 %v326
    %975 = vmatprep.subr.mxu0 %v329
    %976 = vmatpush1.msra.mxu0 %v328
    %977 = vmatprep.subr.mxu0 %v331
    %978 = vmatpush1.msra.mxu0 %v330
    %979 = vmatprep.subr.mxu0 %v333
    %980 = vmatpush1.msra.mxu0 %v332
    %981 = vmatprep.subr.mxu0 %v335
    %982 = vmatpush1.msra.mxu0 %v334
    %983 = vmatprep.subr.mxu0 %v337
    %984 = vmatpush1.msra.mxu0 %v336
    %985 = vmatprep.subr.mxu0 %v339
    %986 = vmatpush1.msra.mxu0 %v338
    %987 = vmatprep.subr.mxu0 %v341
    %988 = vmatpush1.msra.mxu0 %v340
    %989 = vmatprep.subr.mxu0 %v343
    %990 = vmatpush1.msra.mxu0 %v342
    %991 = vmatprep.mubr.f32.mxu0 %v125
    %992 = vmatmul.mubr.f32.gmra.mrb[0].mxu0 %v124
    %v993 = vpop.f32.mrb[0].mxu0
    %v994 = vadd.f32 %v917, %v993
    %v995 = vpop.f32.mrb[0].mxu0
    %v996 = vadd.f32 %v919, %v995
    %997 = vmatprep.mubr.f32.mxu0 %v141
    %998 = vmatmul.mubr.f32.gmra.mrb[0].mxu0 %v140
    %v999 = vpop.f32.mrb[0].mxu0
    %v1000 = vadd.f32 %v923, %v999
    %v1001 = vpop.f32.mrb[0].mxu0
    %v1002 = vadd.f32 %v925, %v1001
    %1003 = vdwg.mxu0
    %1004 = vmatprep.subr.mxu0 %v345
    %1005 = vmatpush1.msra.mxu0 %v344
    %1006 = vmatprep.subr.mxu0 %v347
    %1007 = vmatpush1.msra.mxu0 %v346
    %1008 = vmatprep.subr.mxu0 %v349
    %1009 = vmatpush1.msra.mxu0 %v348
    %1010 = vmatprep.subr.mxu0 %v351
    %1011 = vmatpush1.msra.mxu0 %v350
    %1012 = vmatprep.subr.mxu0 %v353
    %1013 = vmatpush1.msra.mxu0 %v352
    %1014 = vmatprep.subr.mxu0 %v355
    %1015 = vmatpush1.msra.mxu0 %v354
    %1016 = vmatprep.subr.mxu0 %v357
    %1017 = vmatpush1.msra.mxu0 %v356
    %1018 = vmatprep.subr.mxu0 %v359
    %1019 = vmatpush1.msra.mxu0 %v358
    %1020 = vmatprep.subr.mxu0 %v361
    %1021 = vmatpush1.msra.mxu0 %v360
    %1022 = vmatprep.subr.mxu0 %v363
    %1023 = vmatpush1.msra.mxu0 %v362
    %1024 = vmatprep.subr.mxu0 %v365
    %1025 = vmatpush1.msra.mxu0 %v364
    %1026 = vmatprep.subr.mxu0 %v367
    %1027 = vmatpush1.msra.mxu0 %v366
    %1028 = vmatprep.subr.mxu0 %v369
    %1029 = vmatpush1.msra.mxu0 %v368
    %1030 = vmatprep.subr.mxu0 %v371
    %1031 = vmatpush1.msra.mxu0 %v370
    %1032 = vmatprep.subr.mxu0 %v373
    %1033 = vmatpush1.msra.mxu0 %v372
    %1034 = vmatprep.subr.mxu0 %v375
    %1035 = vmatpush1.msra.mxu0 %v374
    %1036 = vmatprep.subr.mxu0 %v377
    %1037 = vmatpush1.msra.mxu0 %v376
    %1038 = vmatprep.subr.mxu0 %v379
    %1039 = vmatpush1.msra.mxu0 %v378
    %1040 = vmatprep.subr.mxu0 %v381
    %1041 = vmatpush1.msra.mxu0 %v380
    %1042 = vmatprep.subr.mxu0 %v383
    %1043 = vmatpush1.msra.mxu0 %v382
    %1044 = vmatprep.subr.mxu0 %v385
    %1045 = vmatpush1.msra.mxu0 %v384
    %1046 = vmatprep.subr.mxu0 %v387
    %1047 = vmatpush1.msra.mxu0 %v386
    %1048 = vmatprep.subr.mxu0 %v389
    %1049 = vmatpush1.msra.mxu0 %v388
    %1050 = vmatprep.subr.mxu0 %v391
    %1051 = vmatpush1.msra.mxu0 %v390
    %1052 = vmatprep.subr.mxu0 %v393
    %1053 = vmatpush1.msra.mxu0 %v392
    %1054 = vmatprep.subr.mxu0 %v395
    %1055 = vmatpush1.msra.mxu0 %v394
    %1056 = vmatprep.subr.mxu0 %v397
    %1057 = vmatpush1.msra.mxu0 %v396
    %1058 = vmatprep.subr.mxu0 %v399
    %1059 = vmatpush1.msra.mxu0 %v398
    %1060 = vmatprep.subr.mxu0 %v401
    %1061 = vmatpush1.msra.mxu0 %v400
    %1062 = vmatprep.subr.mxu0 %v403
    %1063 = vmatpush1.msra.mxu0 %v402
    %1064 = vmatprep.subr.mxu0 %v405
    %1065 = vmatpush1.msra.mxu0 %v404
    %1066 = vmatprep.subr.mxu0 %v407
    %1067 = vmatpush1.msra.mxu0 %v406
    %1068 = vmatprep.mubr.f32.mxu0 %v127
    %1069 = vmatmul.mubr.f32.gmra.mrb[0].mxu0 %v126
    %v1070 = vpop.f32.mrb[0].mxu0
    %v1071 = vadd.f32 %v994, %v1070
    %v1072 = vpop.f32.mrb[0].mxu0
    %v1073 = vadd.f32 %v996, %v1072
    %1074 = vmatprep.mubr.f32.mxu0 %v143
    %1075 = vmatmul.mubr.f32.gmra.mrb[0].mxu0 %v142
    %v1076 = vpop.f32.mrb[0].mxu0
    %v1077 = vadd.f32 %v1000, %v1076
    %v1078 = vpop.f32.mrb[0].mxu0
    %v1079 = vadd.f32 %v1002, %v1078
    %1080 = vdwg.mxu0
    %1081 = vmatprep.subr.mxu0 %v409
    %1082 = vmatpush1.msra.mxu0 %v408
    %1083 = vmatprep.subr.mxu0 %v411
    %1084 = vmatpush1.msra.mxu0 %v410
    %1085 = vmatprep.subr.mxu0 %v413
    %1086 = vmatpush1.msra.mxu0 %v412
    %1087 = vmatprep.subr.mxu0 %v415
    %1088 = vmatpush1.msra.mxu0 %v414
    %1089 = vmatprep.subr.mxu0 %v417
    %1090 = vmatpush1.msra.mxu0 %v416
    %1091 = vmatprep.subr.mxu0 %v419
    %1092 = vmatpush1.msra.mxu0 %v418
    %1093 = vmatprep.subr.mxu0 %v421
    %1094 = vmatpush1.msra.mxu0 %v420
    %1095 = vmatprep.subr.mxu0 %v423
    %1096 = vmatpush1.msra.mxu0 %v422
    %1097 = vmatprep.subr.mxu0 %v425
    %1098 = vmatpush1.msra.mxu0 %v424
    %1099 = vmatprep.subr.mxu0 %v427
    %1100 = vmatpush1.msra.mxu0 %v426
    %1101 = vmatprep.subr.mxu0 %v429
    %1102 = vmatpush1.msra.mxu0 %v428
    %1103 = vmatprep.subr.mxu0 %v431
    %1104 = vmatpush1.msra.mxu0 %v430
    %1105 = vmatprep.subr.mxu0 %v433
    %1106 = vmatpush1.msra.mxu0 %v432
    %1107 = vmatprep.subr.mxu0 %v435
    %1108 = vmatpush1.msra.mxu0 %v434
    %1109 = vmatprep.subr.mxu0 %v437
    %1110 = vmatpush1.msra.mxu0 %v436
    %1111 = vmatprep.subr.mxu0 %v439
    %1112 = vmatpush1.msra.mxu0 %v438
    %1113 = vmatprep.subr.mxu0 %v441
    %1114 = vmatpush1.msra.mxu0 %v440
    %1115 = vmatprep.subr.mxu0 %v443
    %1116 = vmatpush1.msra.mxu0 %v442
    %1117 = vmatprep.subr.mxu0 %v445
    %1118 = vmatpush1.msra.mxu0 %v444
    %1119 = vmatprep.subr.mxu0 %v447
    %1120 = vmatpush1.msra.mxu0 %v446
    %1121 = vmatprep.subr.mxu0 %v449
    %1122 = vmatpush1.msra.mxu0 %v448
    %1123 = vmatprep.subr.mxu0 %v451
    %1124 = vmatpush1.msra.mxu0 %v450
    %1125 = vmatprep.subr.mxu0 %v453
    %1126 = vmatpush1.msra.mxu0 %v452
    %1127 = vmatprep.subr.mxu0 %v455
    %1128 = vmatpush1.msra.mxu0 %v454
    %1129 = vmatprep.subr.mxu0 %v457
    %1130 = vmatpush1.msra.mxu0 %v456
    %1131 = vmatprep.subr.mxu0 %v459
    %1132 = vmatpush1.msra.mxu0 %v458
    %1133 = vmatprep.subr.mxu0 %v461
    %1134 = vmatpush1.msra.mxu0 %v460
    %1135 = vmatprep.subr.mxu0 %v463
    %1136 = vmatpush1.msra.mxu0 %v462
    %1137 = vmatprep.subr.mxu0 %v465
    %1138 = vmatpush1.msra.mxu0 %v464
    %1139 = vmatprep.subr.mxu0 %v467
    %1140 = vmatpush1.msra.mxu0 %v466
    %1141 = vmatprep.subr.mxu0 %v469
    %1142 = vmatpush1.msra.mxu0 %v468
    %1143 = vmatprep.subr.mxu0 %v471
    %1144 = vmatpush1.msra.mxu0 %v470
    %1145 = vmatprep.mubr.f32.mxu0 %v129
    %1146 = vmatmul.mubr.f32.gmra.mrb[0].mxu0 %v128
    %v1147 = vpop.f32.mrb[0].mxu0
    %v1148 = vadd.f32 %v1071, %v1147
    %v1149 = vpop.f32.mrb[0].mxu0
    %v1150 = vadd.f32 %v1073, %v1149
    %1151 = vmatprep.mubr.f32.mxu0 %v145
    %1152 = vmatmul.mubr.f32.gmra.mrb[0].mxu0 %v144
    %v1153 = vpop.f32.mrb[0].mxu0
    %v1154 = vadd.f32 %v1077, %v1153
    %v1155 = vpop.f32.mrb[0].mxu0
    %v1156 = vadd.f32 %v1079, %v1155
    %1157 = vdwg.mxu0
    %1158 = vmatprep.subr.mxu0 %v473
    %1159 = vmatpush1.msra.mxu0 %v472
    %1160 = vmatprep.subr.mxu0 %v475
    %1161 = vmatpush1.msra.mxu0 %v474
    %1162 = vmatprep.subr.mxu0 %v477
    %1163 = vmatpush1.msra.mxu0 %v476
    %1164 = vmatprep.subr.mxu0 %v479
    %1165 = vmatpush1.msra.mxu0 %v478
    %1166 = vmatprep.subr.mxu0 %v481
    %1167 = vmatpush1.msra.mxu0 %v480
    %1168 = vmatprep.subr.mxu0 %v483
    %1169 = vmatpush1.msra.mxu0 %v482
    %1170 = vmatprep.subr.mxu0 %v485
    %1171 = vmatpush1.msra.mxu0 %v484
    %1172 = vmatprep.subr.mxu0 %v487
    %1173 = vmatpush1.msra.mxu0 %v486
    %1174 = vmatprep.subr.mxu0 %v489
    %1175 = vmatpush1.msra.mxu0 %v488
    %1176 = vmatprep.subr.mxu0 %v491
    %1177 = vmatpush1.msra.mxu0 %v490
    %1178 = vmatprep.subr.mxu0 %v493
    %1179 = vmatpush1.msra.mxu0 %v492
    %1180 = vmatprep.subr.mxu0 %v495
    %1181 = vmatpush1.msra.mxu0 %v494
    %1182 = vmatprep.subr.mxu0 %v497
    %1183 = vmatpush1.msra.mxu0 %v496
    %1184 = vmatprep.subr.mxu0 %v499
    %1185 = vmatpush1.msra.mxu0 %v498
    %1186 = vmatprep.subr.mxu0 %v501
    %1187 = vmatpush1.msra.mxu0 %v500
    %1188 = vmatprep.subr.mxu0 %v503
    %1189 = vmatpush1.msra.mxu0 %v502
    %1190 = vmatprep.subr.mxu0 %v505
    %1191 = vmatpush1.msra.mxu0 %v504
    %1192 = vmatprep.subr.mxu0 %v507
    %1193 = vmatpush1.msra.mxu0 %v506
    %1194 = vmatprep.subr.mxu0 %v509
    %1195 = vmatpush1.msra.mxu0 %v508
    %1196 = vmatprep.subr.mxu0 %v511
    %1197 = vmatpush1.msra.mxu0 %v510
    %1198 = vmatprep.subr.mxu0 %v513
    %1199 = vmatpush1.msra.mxu0 %v512
    %1200 = vmatprep.subr.mxu0 %v515
    %1201 = vmatpush1.msra.mxu0 %v514
    %1202 = vmatprep.subr.mxu0 %v517
    %1203 = vmatpush1.msra.mxu0 %v516
    %1204 = vmatprep.subr.mxu0 %v519
    %1205 = vmatpush1.msra.mxu0 %v518
    %1206 = vmatprep.subr.mxu0 %v521
    %1207 = vmatpush1.msra.mxu0 %v520
    %1208 = vmatprep.subr.mxu0 %v523
    %1209 = vmatpush1.msra.mxu0 %v522
    %1210 = vmatprep.subr.mxu0 %v525
    %1211 = vmatpush1.msra.mxu0 %v524
    %1212 = vmatprep.subr.mxu0 %v527
    %1213 = vmatpush1.msra.mxu0 %v526
    %1214 = vmatprep.subr.mxu0 %v529
    %1215 = vmatpush1.msra.mxu0 %v528
    %1216 = vmatprep.subr.mxu0 %v531
    %1217 = vmatpush1.msra.mxu0 %v530
    %1218 = vmatprep.subr.mxu0 %v533
    %1219 = vmatpush1.msra.mxu0 %v532
    %1220 = vmatprep.subr.mxu0 %v535
    %1221 = vmatpush1.msra.mxu0 %v534
    %1222 = vmatprep.mubr.f32.mxu0 %v131
    %1223 = vmatmul.mubr.f32.gmra.mrb[0].mxu0 %v130
    %v1224 = vpop.f32.mrb[0].mxu0
    %v1225 = vadd.f32 %v1148, %v1224
    %v1226 = vpop.f32.mrb[0].mxu0
    %v1227 = vadd.f32 %v1150, %v1226
    %1228 = vmatprep.mubr.f32.mxu0 %v147
    %1229 = vmatmul.mubr.f32.gmra.mrb[0].mxu0 %v146
    %v1230 = vpop.f32.mrb[0].mxu0
    %v1231 = vadd.f32 %v1154, %v1230
    %v1232 = vpop.f32.mrb[0].mxu0
    %v1233 = vadd.f32 %v1156, %v1232
    %1234 = vdwg.mxu0
    %1235 = vmatprep.subr.mxu0 %v537
    %1236 = vmatpush1.msra.mxu0 %v536
    %1237 = vmatprep.subr.mxu0 %v539
    %1238 = vmatpush1.msra.mxu0 %v538
    %1239 = vmatprep.subr.mxu0 %v541
    %1240 = vmatpush1.msra.mxu0 %v540
    %1241 = vmatprep.subr.mxu0 %v543
    %1242 = vmatpush1.msra.mxu0 %v542
    %1243 = vmatprep.subr.mxu0 %v545
    %1244 = vmatpush1.msra.mxu0 %v544
    %1245 = vmatprep.subr.mxu0 %v547
    %1246 = vmatpush1.msra.mxu0 %v546
    %1247 = vmatprep.subr.mxu0 %v549
    %1248 = vmatpush1.msra.mxu0 %v548
    %1249 = vmatprep.subr.mxu0 %v551
    %1250 = vmatpush1.msra.mxu0 %v550
    %1251 = vmatprep.subr.mxu0 %v553
    %1252 = vmatpush1.msra.mxu0 %v552
    %1253 = vmatprep.subr.mxu0 %v555
    %1254 = vmatpush1.msra.mxu0 %v554
    %1255 = vmatprep.subr.mxu0 %v557
    %1256 = vmatpush1.msra.mxu0 %v556
    %1257 = vmatprep.subr.mxu0 %v559
    %1258 = vmatpush1.msra.mxu0 %v558
    %1259 = vmatprep.subr.mxu0 %v561
    %1260 = vmatpush1.msra.mxu0 %v560
    %1261 = vmatprep.subr.mxu0 %v563
    %1262 = vmatpush1.msra.mxu0 %v562
    %1263 = vmatprep.subr.mxu0 %v565
    %1264 = vmatpush1.msra.mxu0 %v564
    %1265 = vmatprep.subr.mxu0 %v567
    %1266 = vmatpush1.msra.mxu0 %v566
    %1267 = vmatprep.subr.mxu0 %v569
    %1268 = vmatpush1.msra.mxu0 %v568
    %1269 = vmatprep.subr.mxu0 %v571
    %1270 = vmatpush1.msra.mxu0 %v570
    %1271 = vmatprep.subr.mxu0 %v573
    %1272 = vmatpush1.msra.mxu0 %v572
    %1273 = vmatprep.subr.mxu0 %v575
    %1274 = vmatpush1.msra.mxu0 %v574
    %1275 = vmatprep.subr.mxu0 %v577
    %1276 = vmatpush1.msra.mxu0 %v576
    %1277 = vmatprep.subr.mxu0 %v579
    %1278 = vmatpush1.msra.mxu0 %v578
    %1279 = vmatprep.subr.mxu0 %v581
    %1280 = vmatpush1.msra.mxu0 %v580
    %1281 = vmatprep.subr.mxu0 %v583
    %1282 = vmatpush1.msra.mxu0 %v582
    %1283 = vmatprep.subr.mxu0 %v585
    %1284 = vmatpush1.msra.mxu0 %v584
    %1285 = vmatprep.subr.mxu0 %v587
    %1286 = vmatpush1.msra.mxu0 %v586
    %1287 = vmatprep.subr.mxu0 %v589
    %1288 = vmatpush1.msra.mxu0 %v588
    %1289 = vmatprep.subr.mxu0 %v591
    %1290 = vmatpush1.msra.mxu0 %v590
    %1291 = vmatprep.subr.mxu0 %v593
    %1292 = vmatpush1.msra.mxu0 %v592
    %1293 = vmatprep.subr.mxu0 %v595
    %1294 = vmatpush1.msra.mxu0 %v594
    %1295 = vmatprep.subr.mxu0 %v597
    %1296 = vmatpush1.msra.mxu0 %v596
    %1297 = vmatprep.subr.mxu0 %v599
    %1298 = vmatpush1.msra.mxu0 %v598
    %1299 = vmatprep.mubr.f32.mxu0 %v133
    %1300 = vmatmul.mubr.f32.gmra.mrb[0].mxu0 %v132
    %v1301 = vpop.f32.mrb[0].mxu0
    %v1302 = vadd.f32 %v1225, %v1301
    %v1303 = vpop.f32.mrb[0].mxu0
    %v1304 = vadd.f32 %v1227, %v1303
    %1305 = vmatprep.mubr.f32.mxu0 %v149
    %1306 = vmatmul.mubr.f32.gmra.mrb[0].mxu0 %v148
    %v1307 = vpop.f32.mrb[0].mxu0
    %v1308 = vadd.f32 %v1231, %v1307
    %v1309 = vpop.f32.mrb[0].mxu0
    %v1310 = vadd.f32 %v1233, %v1309
    %1311 = vdwg.mxu0
    %1312 = vmatprep.subr.mxu0 %v601
    %1313 = vmatpush1.msra.mxu0 %v600
    %1314 = vmatprep.subr.mxu0 %v603
    %1315 = vmatpush1.msra.mxu0 %v602
    %1316 = vmatprep.subr.mxu0 %v605
    %1317 = vmatpush1.msra.mxu0 %v604
    %1318 = vmatprep.subr.mxu0 %v607
    %1319 = vmatpush1.msra.mxu0 %v606
    %1320 = vmatprep.subr.mxu0 %v609
    %1321 = vmatpush1.msra.mxu0 %v608
    %1322 = vmatprep.subr.mxu0 %v611
    %1323 = vmatpush1.msra.mxu0 %v610
    %1324 = vmatprep.subr.mxu0 %v613
    %1325 = vmatpush1.msra.mxu0 %v612
    %1326 = vmatprep.subr.mxu0 %v615
    %1327 = vmatpush1.msra.mxu0 %v614
    %1328 = vmatprep.subr.mxu0 %v617
    %1329 = vmatpush1.msra.mxu0 %v616
    %1330 = vmatprep.subr.mxu0 %v619
    %1331 = vmatpush1.msra.mxu0 %v618
    %1332 = vmatprep.subr.mxu0 %v621
    %1333 = vmatpush1.msra.mxu0 %v620
    %1334 = vmatprep.subr.mxu0 %v623
    %1335 = vmatpush1.msra.mxu0 %v622
    %1336 = vmatprep.subr.mxu0 %v625
    %1337 = vmatpush1.msra.mxu0 %v624
    %1338 = vmatprep.subr.mxu0 %v627
    %1339 = vmatpush1.msra.mxu0 %v626
    %1340 = vmatprep.subr.mxu0 %v629
    %1341 = vmatpush1.msra.mxu0 %v628
    %1342 = vmatprep.subr.mxu0 %v631
    %1343 = vmatpush1.msra.mxu0 %v630
    %1344 = vmatprep.subr.mxu0 %v633
    %1345 = vmatpush1.msra.mxu0 %v632
    %1346 = vmatprep.subr.mxu0 %v635
    %1347 = vmatpush1.msra.mxu0 %v634
    %1348 = vmatprep.subr.mxu0 %v637
    %1349 = vmatpush1.msra.mxu0 %v636
    %1350 = vmatprep.subr.mxu0 %v639
    %1351 = vmatpush1.msra.mxu0 %v638
    %1352 = vmatprep.subr.mxu0 %v641
    %1353 = vmatpush1.msra.mxu0 %v640
    %1354 = vmatprep.subr.mxu0 %v643
    %1355 = vmatpush1.msra.mxu0 %v642
    %1356 = vmatprep.subr.mxu0 %v645
    %1357 = vmatpush1.msra.mxu0 %v644
    %1358 = vmatprep.subr.mxu0 %v647
    %1359 = vmatpush1.msra.mxu0 %v646
    %1360 = vmatprep.subr.mxu0 %v649
    %1361 = vmatpush1.msra.mxu0 %v648
    %1362 = vmatprep.subr.mxu0 %v651
    %1363 = vmatpush1.msra.mxu0 %v650
    %1364 = vmatprep.subr.mxu0 %v653
    %1365 = vmatpush1.msra.mxu0 %v652
    %1366 = vmatprep.subr.mxu0 %v655
    %1367 = vmatpush1.msra.mxu0 %v654
    %1368 = vmatprep.subr.mxu0 %v657
    %1369 = vmatpush1.msra.mxu0 %v656
    %1370 = vmatprep.subr.mxu0 %v659
    %1371 = vmatpush1.msra.mxu0 %v658
    %1372 = vmatprep.subr.mxu0 %v661
    %1373 = vmatpush1.msra.mxu0 %v660
    %1374 = vmatprep.subr.mxu0 %v663
    %1375 = vmatpush1.msra.mxu0 %v662
    %1376 = vmatprep.mubr.f32.mxu0 %v135
    %1377 = vmatmul.mubr.f32.gmra.mrb[0].mxu0 %v134
    %v1378 = vpop.f32.mrb[0].mxu0
    %v1379 = vadd.f32 %v1302, %v1378
    %v1380 = vpop.f32.mrb[0].mxu0
    %v1381 = vadd.f32 %v1304, %v1380
    %1382 = vmatprep.mubr.f32.mxu0 %v151
    %1383 = vmatmul.mubr.f32.gmra.mrb[0].mxu0 %v150
    %v1384 = vpop.f32.mrb[0].mxu0
    %v1385 = vadd.f32 %v1308, %v1384
    %v1386 = vpop.f32.mrb[0].mxu0
    %v1387 = vadd.f32 %v1310, %v1386
    %1388 = vdwg.mxu0
    %v1389 = vld [vmem:[#allocation7] sm:$0xff]
    %v1390 = vld [vmem:[#allocation7 + $0x8] sm:$0xff]
    %v1391 = vld [vmem:[#allocation11] sm:$0xff]
    %v1392 = vld [vmem:[#allocation11 + $0x8] sm:$0xff]
    %v1393 = vld [vmem:[#allocation11 + $0x10] sm:$0xff]
    %v1394 = vld [vmem:[#allocation11 + $0x18] sm:$0xff]
    %v1395 = vld [vmem:[#allocation11 + $0x20] sm:$0xff]
    %v1396 = vld [vmem:[#allocation11 + $0x28] sm:$0xff]
    %v1397 = vld [vmem:[#allocation11 + $0x30] sm:$0xff]
    %v1398 = vld [vmem:[#allocation11 + $0x38] sm:$0xff]
    %v1399 = vld [vmem:[#allocation11 + $0x40] sm:$0xff]
    %v1400 = vld [vmem:[#allocation11 + $0x48] sm:$0xff]
    %v1401 = vld [vmem:[#allocation11 + $0x50] sm:$0xff]
    %v1402 = vld [vmem:[#allocation11 + $0x58] sm:$0xff]
    %v1403 = vld [vmem:[#allocation11 + $0x60] sm:$0xff]
    %v1404 = vld [vmem:[#allocation11 + $0x68] sm:$0xff]
    %v1405 = vld [vmem:[#allocation11 + $0x70] sm:$0x7f]
    %v1406 = vld [vmem:[#allocation11 + $0x78] sm:$0x7f]
    %v1408 = vsel %vm682, %v1389, 0
    %v1411 = vsel %vm682, %v1390, 0
    %v1414 = vsel %vm689, %v1405, 0
    %v1417 = vsel %vm689, %v1406, 0
    %1419 = vmatprep.subr.mxu0 %v1392
    %1420 = vmatpush1.msra.mxu0 %v1391
    %1421 = vmatprep.subr.mxu0 %v1394
    %1422 = vmatpush1.msra.mxu0 %v1393
    %1423 = vmatprep.subr.mxu0 %v1396
    %1424 = vmatpush1.msra.mxu0 %v1395
    %1425 = vmatprep.subr.mxu0 %v1398
    %1426 = vmatpush1.msra.mxu0 %v1397
    %1427 = vmatprep.subr.mxu0 %v1400
    %1428 = vmatpush1.msra.mxu0 %v1399
    %1429 = vmatprep.subr.mxu0 %v1402
    %1430 = vmatpush1.msra.mxu0 %v1401
    %1431 = vmatprep.subr.mxu0 %v1404
    %1432 = vmatpush1.msra.mxu0 %v1403
    %1433 = vmatprep.subr.mxu0 %v1417
    %1434 = vmatpush1.msra.mxu0 %v1414
    %1435 = vmatprep.subr.mxu0 0.0
    %1436 = vmatpush1.msra.mxu0 0.0
    %1437 = vmatprep.subr.mxu0 0.0
    %1438 = vmatpush1.msra.mxu0 0.0
    %1439 = vmatprep.subr.mxu0 0.0
    %1440 = vmatpush1.msra.mxu0 0.0
    %1441 = vmatprep.subr.mxu0 0.0
    %1442 = vmatpush1.msra.mxu0 0.0
    %1443 = vmatprep.subr.mxu0 0.0
    %1444 = vmatpush1.msra.mxu0 0.0
    %1445 = vmatprep.subr.mxu0 0.0
    %1446 = vmatpush1.msra.mxu0 0.0
    %1447 = vmatprep.subr.mxu0 0.0
    %1448 = vmatpush1.msra.mxu0 0.0
    %1449 = vmatprep.subr.mxu0 0.0
    %1450 = vmatpush1.msra.mxu0 0.0
    %1451 = vmatprep.subr.mxu0 0.0
    %1452 = vmatpush1.msra.mxu0 0.0
    %1453 = vmatprep.subr.mxu0 0.0
    %1454 = vmatpush1.msra.mxu0 0.0
    %1455 = vmatprep.subr.mxu0 0.0
    %1456 = vmatpush1.msra.mxu0 0.0
    %1457 = vmatprep.subr.mxu0 0.0
    %1458 = vmatpush1.msra.mxu0 0.0
    %1459 = vmatprep.subr.mxu0 0.0
    %1460 = vmatpush1.msra.mxu0 0.0
    %1461 = vmatprep.subr.mxu0 0.0
    %1462 = vmatpush1.msra.mxu0 0.0
    %1463 = vmatprep.subr.mxu0 0.0
    %1464 = vmatpush1.msra.mxu0 0.0
    %1465 = vmatprep.subr.mxu0 0.0
    %1466 = vmatpush1.msra.mxu0 0.0
    %1467 = vmatprep.subr.mxu0 0.0
    %1468 = vmatpush1.msra.mxu0 0.0
    %1469 = vmatprep.subr.mxu0 0.0
    %1470 = vmatpush1.msra.mxu0 0.0
    %1471 = vmatprep.subr.mxu0 0.0
    %1472 = vmatpush1.msra.mxu0 0.0
    %1473 = vmatprep.subr.mxu0 0.0
    %1474 = vmatpush1.msra.mxu0 0.0
    %1475 = vmatprep.subr.mxu0 0.0
    %1476 = vmatpush1.msra.mxu0 0.0
    %1477 = vmatprep.subr.mxu0 0.0
    %1478 = vmatpush1.msra.mxu0 0.0
    %1479 = vmatprep.subr.mxu0 0.0
    %1480 = vmatpush1.msra.mxu0 0.0
    %1481 = vmatprep.subr.mxu0 0.0
    %1482 = vmatpush1.msra.mxu0 0.0
    %1483 = vmatprep.mubr.f32.mxu0 0.0
    %1484 = vmatmul.mubr.f32.gmra.mrb[0].mxu0 %v1408
    %v1485 = vpop.f32.mrb[0].mxu0
    %v1486 = vadd.f32 0.0, %v1485
    %v1487 = vpop.f32.mrb[0].mxu0
    %v1488 = vadd.f32 0.0, %v1487
    %1489 = vmatprep.mubr.f32.mxu0 0.0
    %1490 = vmatmul.mubr.f32.gmra.mrb[0].mxu0 %v1411
    %v1491 = vpop.f32.mrb[0].mxu0
    %v1492 = vadd.f32 0.0, %v1491
    %v1493 = vpop.f32.mrb[0].mxu0
    %v1494 = vadd.f32 0.0, %v1493
    %1495 = vdwg.mxu0
    %v1496 = vadd.f32 %v1379, %v1486
    %v1497 = vadd.f32 %v1381, %v1488
    %v1498 = vadd.f32 %v1385, %v1492
    %v1499 = vadd.f32 %v1387, %v1494
    %v1500 = vld [vmem:[#allocation13] sm:$0x3]
    %v1502 = vlaneseq
    %v1503 = vshrl.u32 %v1502, 7
    %v1504 = vsub.s32 0, %v1503
    %v1505 = vrot.slane %v1500, %v1504
    %v1506 = vlaneseq
    %v1507 = vshrl.u32 %v1506, 7
    %v1508 = vsub.s32 1, %v1507
    %v1509 = vrot.slane %v1500, %v1508
    %v1512 = vadd.f32 %v1496, %v1505
    %v1513 = vadd.f32 %v1497, %v1509
    %v1514 = vadd.f32 %v1498, %v1505
    %v1515 = vadd.f32 %v1499, %v1509
    %1516 = vst [vmem:[#allocation14] sm:$0xff] %v1512
    %1517 = vst [vmem:[#allocation14 + $0x8] sm:$0xff] %v1513
    %1518 = vst [vmem:[#allocation14 + $0x10] sm:$0xff] %v1514
    %1519 = vst [vmem:[#allocation14 + $0x18] sm:$0xff] %v1515
    // Predicated region
    $region58: #{tpu_custom_call.1} parent=1 // pred_check
      _
    $region59: #{tpu_custom_call.1} parent=1 // pred_check_branch
      %1521 = sbr.rel (0) target = $region61
    $region60: #{tpu_custom_call.1} parent=1 // pred_region
      %s1523 = ssub.s32 512, 512
      %1524 = vsyncadd [#allocation4], %s1523
      %s1525 = sshll.u32 [#allocation14], 4
      %s1526 = int_to_ptr.vmem [resolvable:$true] %s1525
      %1531 = dma.vmem_to_hbm [thread:$0]  %s1526, 512, %s7, [#allocation4], 256, 256, 16
    $region61: #{tpu_custom_call.1} parent=1 // pred_fallthru
      _
    // Predicated region
    $region62: #{tpu_custom_call.1} parent=1 // pred_check
      _
    $region63: #{tpu_custom_call.1} parent=1 // pred_check_branch
      %1533 = sbr.rel (0) target = $region65
    $region64: #{tpu_custom_call.1} parent=1 // pred_region
      %1534 = dma.done [#allocation4], 512
    $region65: #{tpu_custom_call.1} parent=1 // pred_fallthru
      _
    %1535 = vsyncpa [#allocation3], 1
    %1536 = vsyncpa [#allocation6], 1
    %1537 = vsyncpa [#allocation9], 1
    %1538 = vsyncpa [#allocation12], 1
    %1539 = vsyncpa [#allocation4], 1

</llo_original>
